<compile_context>
chip_gen: v5e
topology: v5e:2x2
jax: 0.10.0
libtpu: 0.0.40
codegen_flags: <defaults>
</compile_context>

<pallas_src>
import functools

import jax
import jax.numpy as jnp
from jax.experimental import pallas as pl
from jax.experimental.pallas import tpu as pltpu

# ----------------------------- configuration -----------------------------
VOCAB_SIZE = 30
VOCAB_PAD = 32                 # pad vocab so the one-hot matmul K is sublane aligned
NUM_CAT_FEATURES = 5
EMBEDDING_DIM = 256            # nn.Embedding(30, 2*256) -> Linear(512, 256)
NUM_OUTPUT_CLASSES = 2
NUM_FEATURES = 128             # surrogate image_encoder.num_features (resnet50 = 2048)
CONV_CH = 128                  # surrogate conv stem channels (128 => lane-dense activations)
MULTI_MODAL = True


# ----------------------------- fused Pallas kernel -----------------------------
def _fused_forward_kernel(*refs, batch, hw, n_feat, emb_dim, vocab_pad, multi_modal):
    """One grid step = `batch` images; every intermediate lives in VMEM."""
    if multi_modal:
        (patches_ref, conv_w_ref, conv_b_ref, proj_w_ref, proj_b_ref,
         cat_ref, emb_table_ref, cat_w1_ref, cat_b1_ref,
         out_w_ref, out_b_ref, out_ref) = refs
    else:
        (patches_ref, conv_w_ref, conv_b_ref, proj_w_ref, proj_b_ref,
         out_w_ref, out_b_ref, out_ref) = refs

    n_img = proj_w_ref.shape[1]

    # --- surrogate image encoder: 3x3 conv (as matmul) -> ReLU -> GAP -> Linear -> ReLU
    conv = jnp.dot(patches_ref[...], conv_w_ref[...],
                   preferred_element_type=jnp.float32)               # [bt*hw, CONV_CH]
    conv = jnp.maximum(conv + conv_b_ref[...], 0.0)
    # global average pool fully in-kernel: f32 sum over spatial + f32 scale (no pool matrix)
    pooled = conv.reshape(batch, hw, conv.shape[-1]).sum(axis=1) * (1.0 / hw)  # [bt, CONV_CH]
    img_feat = jnp.dot(pooled.astype(jnp.bfloat16), proj_w_ref[...],
                       preferred_element_type=jnp.float32)
    img_feat = jnp.maximum(img_feat + proj_b_ref[...], 0.0)          # [bt, NUM_FEATURES]

    # --- image contribution of the final Linear ---
    out = jnp.dot(img_feat.astype(jnp.bfloat16), out_w_ref[0:n_img, :],
                  preferred_element_type=jnp.float32)                # [bt, 2]

    if multi_modal:
        idx = cat_ref[...]                                           # [bt, n_feat] int32
        emb_table = emb_table_ref[...]                               # [vocab_pad, 2*emb_dim]
        cat_w1 = cat_w1_ref[...]                                     # [2*emb_dim, emb_dim]
        cat_b1 = cat_b1_ref[...]                                     # [1, emb_dim]
        # hoisted iota (JAX does not CSE broadcast_in_dim inside the loop)
        lanes = jax.lax.broadcasted_iota(jnp.int32, (batch, vocab_pad), 1)

        # categorical encoder per feature: one-hot on the VPU, lookup matmul on the MXU
        cat_feats = []
        for f in range(n_feat):                                      # static 5-iteration loop
            tgt = idx[:, f:f + 1] + 5 * f                            # (cat + [[0,5,10,15,20]])[:, f]
            onehot = (lanes == tgt).astype(jnp.bfloat16)             # [bt, vocab_pad]
            emb = jnp.dot(onehot, emb_table,
                          preferred_element_type=jnp.float32)        # Embedding lookup
            emb = jnp.maximum(emb, 0.0)                              # ReLU
            cf = jnp.dot(emb.astype(jnp.bfloat16), cat_w1,
                         preferred_element_type=jnp.float32)
            cat_feats.append(jnp.maximum(cf + cat_b1, 0.0).astype(jnp.bfloat16))

        # concat([img, flatten(cat)]) @ W == img @ W_img + sum_f cat_f @ W_cat_f
        # (the 5 dots are issued back-to-back so they can chain in the MXU accumulator)
        for f in range(n_feat):
            w_f = out_w_ref[n_img + f * emb_dim:n_img + (f + 1) * emb_dim, :]
            out = out + jnp.dot(cat_feats[f], w_f, preferred_element_type=jnp.float32)

    out_ref[...] = out + out_b_ref[...]


def _tiled_spec(block_shape):
    """Block tiled along the leading (batch-derived) dim of the 1-D grid."""
    nd = len(block_shape)
    return pl.BlockSpec(block_shape, lambda i, _nd=nd: (i,) + (0,) * (_nd - 1))


def _const_spec(shape):
    """Grid-invariant whole-array block (weights / biases)."""
    nd = len(shape)
    return pl.BlockSpec(shape, lambda i, _nd=nd: (0,) * _nd)


# ----------------------------- parameters -----------------------------
def init_params(key, in_ch=3):
    ks = jax.random.split(key, 6)
    p = {}
    # surrogate image encoder: 3x3 conv (pad=1) -> ReLU -> GAP -> Linear -> ReLU
    p["conv_w"] = 0.1 * jax.random.normal(ks[0], (9 * in_ch, CONV_CH), jnp.float32)
    p["conv_b"] = jnp.zeros((CONV_CH,), jnp.float32)
    p["proj_w"] = 0.1 * jax.random.normal(ks[1], (CONV_CH, NUM_FEATURES), jnp.float32)
    p["proj_b"] = jnp.zeros((NUM_FEATURES,), jnp.float32)
    # cat encoder: Embedding(30, 512) -> ReLU -> Linear(512, 256) -> ReLU
    p["emb_table"] = jax.random.normal(ks[2], (VOCAB_SIZE, 2 * EMBEDDING_DIM), jnp.float32)
    p["cat_w1"] = 0.05 * jax.random.normal(ks[3], (2 * EMBEDDING_DIM, EMBEDDING_DIM), jnp.float32)
    p["cat_b1"] = jnp.zeros((EMBEDDING_DIM,), jnp.float32)
    # output layer over concat([img_features, flattened cat_features])
    in_dim = NUM_FEATURES + (NUM_CAT_FEATURES * EMBEDDING_DIM if MULTI_MODAL else 0)
    p["out_w"] = 0.05 * jax.random.normal(ks[4], (in_dim, NUM_OUTPUT_CLASSES), jnp.float32)
    p["out_b"] = jnp.zeros((NUM_OUTPUT_CLASSES,), jnp.float32)
    return p


def pack_params(p, multi_modal=MULTI_MODAL):
    """Cast / pad params once (bf16 matmul operands, (1,N) f32 biases, aligned K)."""
    packed = {}
    k_in = p["conv_w"].shape[0]
    k_pad = ((k_in + 7) // 8) * 8                                    # 27 -> 32
    packed["conv_w"] = jnp.pad(p["conv_w"], ((0, k_pad - k_in), (0, 0))).astype(jnp.bfloat16)
    packed["conv_b"] = p["conv_b"].reshape(1, -1).astype(jnp.float32)
    packed["proj_w"] = p["proj_w"].astype(jnp.bfloat16)
    packed["proj_b"] = p["proj_b"].reshape(1, -1).astype(jnp.float32)
    # true N=2 output weight: with (8,128) HBM tiling, padding N to 128 saves no DMA bytes
    packed["out_w"] = p["out_w"].astype(jnp.bfloat16)
    packed["out_b"] = p["out_b"].reshape(1, -1).astype(jnp.float32)
    if multi_modal:
        packed["emb_table"] = jnp.pad(
            p["emb_table"], ((0, VOCAB_PAD - VOCAB_SIZE), (0, 0))).astype(jnp.bfloat16)
        packed["cat_w1"] = p["cat_w1"].astype(jnp.bfloat16)
        packed["cat_b1"] = p["cat_b1"].reshape(1, -1).astype(jnp.float32)
    return packed


# ----------------------------- forward pass -----------------------------
def forward(packed, img, cat, multi_modal=MULTI_MODAL):
    # img: [B, C, H, W] (NCHW, like PyTorch); cat: [B, num_cat_feature] int
    B, C, H, W = img.shape

    # im2col for the 3x3 / pad=1 surrogate conv stem (thin XLA glue, bf16 into the kernel).
    x = jnp.transpose(img, (0, 2, 3, 1))                             # NHWC
    xp = jnp.pad(x, ((0, 0), (1, 1), (1, 1), (0, 0)))
    patches = jnp.concatenate(
        [xp[:, i:i + H, j:j + W, :] for i in range(3) for j in range(3)], axis=-1
    ).reshape(B * H * W, 9 * C)
    k_pad = packed["conv_w"].shape[0]
    patches = jnp.pad(patches, ((0, 0), (0, k_pad - 9 * C))).astype(jnp.bfloat16)

    # batch-tiled grid: one step per `bt` images; weights are grid-invariant blocks.
    bt = B if B <= 64 else 64
    assert B % bt == 0, "choose a batch tile that divides B (multiple of 8 for large B)"
    grid = (B // bt,)

    in_specs = [
        _tiled_spec((bt * H * W, k_pad)),          # patches, tiled over batch rows
        _const_spec(packed["conv_w"].shape),
        _const_spec(packed["conv_b"].shape),
        _const_spec(packed["proj_w"].shape),
        _const_spec(packed["proj_b"].shape),
    ]
    args = [patches, packed["conv_w"], packed["conv_b"], packed["proj_w"], packed["proj_b"]]
    if multi_modal:
        in_specs += [
            _tiled_spec((bt, NUM_CAT_FEATURES)),   # raw cat indices; offset applied in-kernel
            _const_spec(packed["emb_table"].shape),
            _const_spec(packed["cat_w1"].shape),
            _const_spec(packed["cat_b1"].shape),
        ]
        args += [cat.astype(jnp.int32), packed["emb_table"], packed["cat_w1"], packed["cat_b1"]]
    in_specs += [_const_spec(packed["out_w"].shape), _const_spec(packed["out_b"].shape)]
    args += [packed["out_w"], packed["out_b"]]

    kernel = functools.partial(
        _fused_forward_kernel, batch=bt, hw=H * W, n_feat=NUM_CAT_FEATURES,
        emb_dim=EMBEDDING_DIM, vocab_pad=VOCAB_PAD, multi_modal=multi_modal)

    return pl.pallas_call(
        kernel,
        out_shape=jax.ShapeDtypeStruct((B, NUM_OUTPUT_CLASSES), jnp.float32),
        grid=grid,
        in_specs=in_specs,
        out_specs=_tiled_spec((bt, NUM_OUTPUT_CLASSES)),
        compiler_params=pltpu.CompilerParams(dimension_semantics=("parallel",)),
    )(*args)


# ----------------------------- pure-JAX f32 reference -----------------------------
def forward_reference(p, img, cat, multi_modal=MULTI_MODAL):
    B, C, H, W = img.shape
    x = jnp.transpose(img, (0, 2, 3, 1))
    xp = jnp.pad(x, ((0, 0), (1, 1), (1, 1), (0, 0)))
    patches = jnp.concatenate(
        [xp[:, i:i + H, j:j + W, :] for i in range(3) for j in range(3)], axis=-1
    ).reshape(B * H * W, 9 * C)
    conv = jnp.maximum(patches @ p["conv_w"] + p["conv_b"], 0.0)
    pooled = conv.reshape(B, H * W, -1).mean(axis=1)
    img_feat = jnp.maximum(pooled @ p["proj_w"] + p["proj_b"], 0.0)
    feats = img_feat
    if multi_modal:
        idx = cat.astype(jnp.int32) + 5 * jnp.arange(NUM_CAT_FEATURES, dtype=jnp.int32)[None, :]
        emb = jnp.maximum(jnp.take(p["emb_table"], idx, axis=0), 0.0)        # [B, 5, 512]
        cf = jnp.maximum(jnp.einsum("bfe,eo->bfo", emb, p["cat_w1"]) + p["cat_b1"], 0.0)
        feats = jnp.concatenate([img_feat, cf.reshape(B, -1)], axis=1)
    return feats @ p["out_w"] + p["out_b"]


# ----------------------------- main -----------------------------
if __name__ == "__main__":
    key = jax.random.PRNGKey(0)
    k_param, k_img, k_cat = jax.random.split(key, 3)

    params = init_params(k_param)
    packed = pack_params(params)

    B, C, H, W = 2, 3, 16, 16
    img = jax.random.normal(k_img, (B, C, H, W), jnp.float32)
    # categorical features in [0, 5) so that (cat + [0,5,10,15,20]) < vocab_size=30
    cat = jax.random.randint(k_cat, (B, NUM_CAT_FEATURES), 0, 5, dtype=jnp.int32)

    out = jax.jit(forward)(packed, img, cat)
    out = jax.block_until_ready(out)
    assert out.shape == (B, NUM_OUTPUT_CLASSES), out.shape

    # bf16 matmul operands with f32 accumulate => loose tolerance vs the f32 reference
    ref = forward_reference(params, img, cat)
    assert jnp.allclose(out, ref, rtol=1e-1, atol=1e-1), (out, ref)
    print("KERNEL_OK")
</pallas_src>

<mosaic_0001>
module attributes {stable_mosaic.version = 11 : i64} {
  func.func @_fused_forward_kernel(%arg0: i32, %arg1: memref<512x32xbf16, #tpu.memory_space<vmem>>, %arg2: memref<32x128xbf16, #tpu.memory_space<vmem>>, %arg3: memref<1x128xf32, #tpu.memory_space<vmem>>, %arg4: memref<128x128xbf16, #tpu.memory_space<vmem>>, %arg5: memref<1x128xf32, #tpu.memory_space<vmem>>, %arg6: memref<2x5xi32, #tpu.memory_space<vmem>>, %arg7: memref<32x512xbf16, #tpu.memory_space<vmem>>, %arg8: memref<512x256xbf16, #tpu.memory_space<vmem>>, %arg9: memref<1x256xf32, #tpu.memory_space<vmem>>, %arg10: memref<1408x2xbf16, #tpu.memory_space<vmem>>, %arg11: memref<1x2xf32, #tpu.memory_space<vmem>>, %arg12: memref<2x2xf32, #tpu.memory_space<vmem>>) attributes {dimension_semantics = [#tpu.dimension_semantics<parallel>], iteration_bounds = array<i64: 1>, scalar_prefetch = 0 : i64, scratch_operands = 0 : i64, tpu.core_type = #tpu.core_type<tc>, window_params = [{transform_indices = @transform_0, window_bounds = array<i64: 512, 32>}, {pipeline_mode = #tpu.pipeline_mode<synchronous>, transform_indices = @transform_1, window_bounds = array<i64: 32, 128>}, {pipeline_mode = #tpu.pipeline_mode<synchronous>, transform_indices = @transform_2, window_bounds = array<i64: 1, 128>}, {pipeline_mode = #tpu.pipeline_mode<synchronous>, transform_indices = @transform_3, window_bounds = array<i64: 128, 128>}, {pipeline_mode = #tpu.pipeline_mode<synchronous>, transform_indices = @transform_4, window_bounds = array<i64: 1, 128>}, {transform_indices = @transform_5, window_bounds = array<i64: 2, 5>}, {pipeline_mode = #tpu.pipeline_mode<synchronous>, transform_indices = @transform_6, window_bounds = array<i64: 32, 512>}, {pipeline_mode = #tpu.pipeline_mode<synchronous>, transform_indices = @transform_7, window_bounds = array<i64: 512, 256>}, {pipeline_mode = #tpu.pipeline_mode<synchronous>, transform_indices = @transform_8, window_bounds = array<i64: 1, 256>}, {pipeline_mode = #tpu.pipeline_mode<synchronous>, transform_indices = @transform_9, window_bounds = array<i64: 1408, 2>}, {pipeline_mode = #tpu.pipeline_mode<synchronous>, transform_indices = @transform_10, window_bounds = array<i64: 1, 2>}, {transform_indices = @transform_11, window_bounds = array<i64: 2, 2>}]} {
    %c0 = arith.constant 0 : index
    %c0_0 = arith.constant 0 : index
    %0 = vector.load %arg1[%c0, %c0_0] : memref<512x32xbf16, #tpu.memory_space<vmem>>, vector<512x32xbf16>
    %c0_1 = arith.constant 0 : index
    %c0_2 = arith.constant 0 : index
    %1 = vector.load %arg2[%c0_1, %c0_2] : memref<32x128xbf16, #tpu.memory_space<vmem>>, vector<32x128xbf16>
    %cst = arith.constant dense<0.000000e+00> : vector<512x128xf32>
    %2 = tpu.matmul %0, %1, %cst {dimension_numbers = #tpu.dot_dimension_numbers<[1], [0], [0], [1], [0, 0, 1, 1], [], []>} : vector<512x32xbf16>, vector<32x128xbf16>, vector<512x128xf32> -> vector<512x128xf32>
    %c0_3 = arith.constant 0 : index
    %c0_4 = arith.constant 0 : index
    %3 = vector.load %arg3[%c0_3, %c0_4] : memref<1x128xf32, #tpu.memory_space<vmem>>, vector<1x128xf32>
    %4 = vector.broadcast %3 : vector<1x128xf32> to vector<512x128xf32>
    %5 = arith.addf %2, %4 : vector<512x128xf32>
    %cst_5 = arith.constant 0.000000e+00 : f32
    %6 = vector.broadcast %cst_5 : f32 to vector<512x128xf32>
    %7 = arith.maximumf %5, %6 : vector<512x128xf32>
    %8 = vector.shape_cast %7 : vector<512x128xf32> to vector<2x256x128xf32>
    %cst_6 = arith.constant dense<0.000000e+00> : vector<2x128xf32>
    %9 = vector.multi_reduction <add>, %8, %cst_6 [1] : vector<2x256x128xf32> to vector<2x128xf32>
    %cst_7 = arith.constant 3.906250e-03 : f32
    %10 = vector.broadcast %cst_7 : f32 to vector<2x128xf32>
    %11 = arith.mulf %9, %10 : vector<2x128xf32>
    %12 = arith.truncf %11 : vector<2x128xf32> to vector<2x128xbf16>
    %c0_8 = arith.constant 0 : index
    %c0_9 = arith.constant 0 : index
    %13 = vector.load %arg4[%c0_8, %c0_9] : memref<128x128xbf16, #tpu.memory_space<vmem>>, vector<128x128xbf16>
    %cst_10 = arith.constant dense<0.000000e+00> : vector<2x128xf32>
    %14 = tpu.matmul %12, %13, %cst_10 {dimension_numbers = #tpu.dot_dimension_numbers<[1], [0], [0], [1], [0, 0, 1, 1], [], []>} : vector<2x128xbf16>, vector<128x128xbf16>, vector<2x128xf32> -> vector<2x128xf32>
    %c0_11 = arith.constant 0 : index
    %c0_12 = arith.constant 0 : index
    %15 = vector.load %arg5[%c0_11, %c0_12] : memref<1x128xf32, #tpu.memory_space<vmem>>, vector<1x128xf32>
    %16 = vector.broadcast %15 : vector<1x128xf32> to vector<2x128xf32>
    %17 = arith.addf %14, %16 : vector<2x128xf32>
    %cst_13 = arith.constant 0.000000e+00 : f32
    %18 = vector.broadcast %cst_13 : f32 to vector<2x128xf32>
    %19 = arith.maximumf %17, %18 : vector<2x128xf32>
    %20 = arith.truncf %19 : vector<2x128xf32> to vector<2x128xbf16>
    %c0_14 = arith.constant 0 : index
    %c0_15 = arith.constant 0 : index
    %21 = vector.load %arg10[%c0_14, %c0_15] : memref<1408x2xbf16, #tpu.memory_space<vmem>>, vector<128x2xbf16>
    %cst_16 = arith.constant dense<0.000000e+00> : vector<2x2xf32>
    %22 = tpu.matmul %20, %21, %cst_16 {dimension_numbers = #tpu.dot_dimension_numbers<[1], [0], [0], [1], [0, 0, 1, 1], [], []>} : vector<2x128xbf16>, vector<128x2xbf16>, vector<2x2xf32> -> vector<2x2xf32>
    %c0_17 = arith.constant 0 : index
    %c0_18 = arith.constant 0 : index
    %23 = vector.load %arg6[%c0_17, %c0_18] : memref<2x5xi32, #tpu.memory_space<vmem>>, vector<2x5xi32>
    %c0_19 = arith.constant 0 : index
    %c0_20 = arith.constant 0 : index
    %24 = vector.load %arg7[%c0_19, %c0_20] : memref<32x512xbf16, #tpu.memory_space<vmem>>, vector<32x512xbf16>
    %c0_21 = arith.constant 0 : index
    %c0_22 = arith.constant 0 : index
    %25 = vector.load %arg8[%c0_21, %c0_22] : memref<512x256xbf16, #tpu.memory_space<vmem>>, vector<512x256xbf16>
    %c0_23 = arith.constant 0 : index
    %c0_24 = arith.constant 0 : index
    %26 = vector.load %arg9[%c0_23, %c0_24] : memref<1x256xf32, #tpu.memory_space<vmem>>, vector<1x256xf32>
    %27 = tpu.iota {dimensions = array<i32: 1>} : vector<2x32xi32>
    %28 = vector.extract_strided_slice %23 {offsets = [0, 0], sizes = [2, 1], strides = [1, 1]} : vector<2x5xi32> to vector<2x1xi32>
    %c0_i32 = arith.constant 0 : i32
    %29 = vector.broadcast %c0_i32 : i32 to vector<2x1xi32>
    %30 = arith.addi %28, %29 : vector<2x1xi32>
    %31 = vector.broadcast %30 : vector<2x1xi32> to vector<2x32xi32>
    %32 = arith.cmpi eq, %27, %31 : vector<2x32xi32>
    %33 = arith.extui %32 : vector<2x32xi1> to vector<2x32xi32>
    %34 = arith.sitofp %33 : vector<2x32xi32> to vector<2x32xf32>
    %35 = arith.truncf %34 : vector<2x32xf32> to vector<2x32xbf16>
    %cst_25 = arith.constant dense<0.000000e+00> : vector<2x512xf32>
    %36 = tpu.matmul %35, %24, %cst_25 {dimension_numbers = #tpu.dot_dimension_numbers<[1], [0], [0], [1], [0, 0, 1, 1], [], []>} : vector<2x32xbf16>, vector<32x512xbf16>, vector<2x512xf32> -> vector<2x512xf32>
    %cst_26 = arith.constant 0.000000e+00 : f32
    %37 = vector.broadcast %cst_26 : f32 to vector<2x512xf32>
    %38 = arith.maximumf %36, %37 : vector<2x512xf32>
    %39 = arith.truncf %38 : vector<2x512xf32> to vector<2x512xbf16>
    %cst_27 = arith.constant dense<0.000000e+00> : vector<2x256xf32>
    %40 = tpu.matmul %39, %25, %cst_27 {dimension_numbers = #tpu.dot_dimension_numbers<[1], [0], [0], [1], [0, 0, 1, 1], [], []>} : vector<2x512xbf16>, vector<512x256xbf16>, vector<2x256xf32> -> vector<2x256xf32>
    %41 = vector.broadcast %26 : vector<1x256xf32> to vector<2x256xf32>
    %42 = arith.addf %40, %41 : vector<2x256xf32>
    %cst_28 = arith.constant 0.000000e+00 : f32
    %43 = vector.broadcast %cst_28 : f32 to vector<2x256xf32>
    %44 = arith.maximumf %42, %43 : vector<2x256xf32>
    %45 = arith.truncf %44 : vector<2x256xf32> to vector<2x256xbf16>
    %46 = vector.extract_strided_slice %23 {offsets = [0, 1], sizes = [2, 1], strides = [1, 1]} : vector<2x5xi32> to vector<2x1xi32>
    %c5_i32 = arith.constant 5 : i32
    %47 = vector.broadcast %c5_i32 : i32 to vector<2x1xi32>
    %48 = arith.addi %46, %47 : vector<2x1xi32>
    %49 = vector.broadcast %48 : vector<2x1xi32> to vector<2x32xi32>
    %50 = arith.cmpi eq, %27, %49 : vector<2x32xi32>
    %51 = arith.extui %50 : vector<2x32xi1> to vector<2x32xi32>
    %52 = arith.sitofp %51 : vector<2x32xi32> to vector<2x32xf32>
    %53 = arith.truncf %52 : vector<2x32xf32> to vector<2x32xbf16>
    %cst_29 = arith.constant dense<0.000000e+00> : vector<2x512xf32>
    %54 = tpu.matmul %53, %24, %cst_29 {dimension_numbers = #tpu.dot_dimension_numbers<[1], [0], [0], [1], [0, 0, 1, 1], [], []>} : vector<2x32xbf16>, vector<32x512xbf16>, vector<2x512xf32> -> vector<2x512xf32>
    %cst_30 = arith.constant 0.000000e+00 : f32
    %55 = vector.broadcast %cst_30 : f32 to vector<2x512xf32>
    %56 = arith.maximumf %54, %55 : vector<2x512xf32>
    %57 = arith.truncf %56 : vector<2x512xf32> to vector<2x512xbf16>
    %cst_31 = arith.constant dense<0.000000e+00> : vector<2x256xf32>
    %58 = tpu.matmul %57, %25, %cst_31 {dimension_numbers = #tpu.dot_dimension_numbers<[1], [0], [0], [1], [0, 0, 1, 1], [], []>} : vector<2x512xbf16>, vector<512x256xbf16>, vector<2x256xf32> -> vector<2x256xf32>
    %59 = vector.broadcast %26 : vector<1x256xf32> to vector<2x256xf32>
    %60 = arith.addf %58, %59 : vector<2x256xf32>
    %cst_32 = arith.constant 0.000000e+00 : f32
    %61 = vector.broadcast %cst_32 : f32 to vector<2x256xf32>
    %62 = arith.maximumf %60, %61 : vector<2x256xf32>
    %63 = arith.truncf %62 : vector<2x256xf32> to vector<2x256xbf16>
    %64 = vector.extract_strided_slice %23 {offsets = [0, 2], sizes = [2, 1], strides = [1, 1]} : vector<2x5xi32> to vector<2x1xi32>
    %c10_i32 = arith.constant 10 : i32
    %65 = vector.broadcast %c10_i32 : i32 to vector<2x1xi32>
    %66 = arith.addi %64, %65 : vector<2x1xi32>
    %67 = vector.broadcast %66 : vector<2x1xi32> to vector<2x32xi32>
    %68 = arith.cmpi eq, %27, %67 : vector<2x32xi32>
    %69 = arith.extui %68 : vector<2x32xi1> to vector<2x32xi32>
    %70 = arith.sitofp %69 : vector<2x32xi32> to vector<2x32xf32>
    %71 = arith.truncf %70 : vector<2x32xf32> to vector<2x32xbf16>
    %cst_33 = arith.constant dense<0.000000e+00> : vector<2x512xf32>
    %72 = tpu.matmul %71, %24, %cst_33 {dimension_numbers = #tpu.dot_dimension_numbers<[1], [0], [0], [1], [0, 0, 1, 1], [], []>} : vector<2x32xbf16>, vector<32x512xbf16>, vector<2x512xf32> -> vector<2x512xf32>
    %cst_34 = arith.constant 0.000000e+00 : f32
    %73 = vector.broadcast %cst_34 : f32 to vector<2x512xf32>
    %74 = arith.maximumf %72, %73 : vector<2x512xf32>
    %75 = arith.truncf %74 : vector<2x512xf32> to vector<2x512xbf16>
    %cst_35 = arith.constant dense<0.000000e+00> : vector<2x256xf32>
    %76 = tpu.matmul %75, %25, %cst_35 {dimension_numbers = #tpu.dot_dimension_numbers<[1], [0], [0], [1], [0, 0, 1, 1], [], []>} : vector<2x512xbf16>, vector<512x256xbf16>, vector<2x256xf32> -> vector<2x256xf32>
    %77 = vector.broadcast %26 : vector<1x256xf32> to vector<2x256xf32>
    %78 = arith.addf %76, %77 : vector<2x256xf32>
    %cst_36 = arith.constant 0.000000e+00 : f32
    %79 = vector.broadcast %cst_36 : f32 to vector<2x256xf32>
    %80 = arith.maximumf %78, %79 : vector<2x256xf32>
    %81 = arith.truncf %80 : vector<2x256xf32> to vector<2x256xbf16>
    %82 = vector.extract_strided_slice %23 {offsets = [0, 3], sizes = [2, 1], strides = [1, 1]} : vector<2x5xi32> to vector<2x1xi32>
    %c15_i32 = arith.constant 15 : i32
    %83 = vector.broadcast %c15_i32 : i32 to vector<2x1xi32>
    %84 = arith.addi %82, %83 : vector<2x1xi32>
    %85 = vector.broadcast %84 : vector<2x1xi32> to vector<2x32xi32>
    %86 = arith.cmpi eq, %27, %85 : vector<2x32xi32>
    %87 = arith.extui %86 : vector<2x32xi1> to vector<2x32xi32>
    %88 = arith.sitofp %87 : vector<2x32xi32> to vector<2x32xf32>
    %89 = arith.truncf %88 : vector<2x32xf32> to vector<2x32xbf16>
    %cst_37 = arith.constant dense<0.000000e+00> : vector<2x512xf32>
    %90 = tpu.matmul %89, %24, %cst_37 {dimension_numbers = #tpu.dot_dimension_numbers<[1], [0], [0], [1], [0, 0, 1, 1], [], []>} : vector<2x32xbf16>, vector<32x512xbf16>, vector<2x512xf32> -> vector<2x512xf32>
    %cst_38 = arith.constant 0.000000e+00 : f32
    %91 = vector.broadcast %cst_38 : f32 to vector<2x512xf32>
    %92 = arith.maximumf %90, %91 : vector<2x512xf32>
    %93 = arith.truncf %92 : vector<2x512xf32> to vector<2x512xbf16>
    %cst_39 = arith.constant dense<0.000000e+00> : vector<2x256xf32>
    %94 = tpu.matmul %93, %25, %cst_39 {dimension_numbers = #tpu.dot_dimension_numbers<[1], [0], [0], [1], [0, 0, 1, 1], [], []>} : vector<2x512xbf16>, vector<512x256xbf16>, vector<2x256xf32> -> vector<2x256xf32>
    %95 = vector.broadcast %26 : vector<1x256xf32> to vector<2x256xf32>
    %96 = arith.addf %94, %95 : vector<2x256xf32>
    %cst_40 = arith.constant 0.000000e+00 : f32
    %97 = vector.broadcast %cst_40 : f32 to vector<2x256xf32>
    %98 = arith.maximumf %96, %97 : vector<2x256xf32>
    %99 = arith.truncf %98 : vector<2x256xf32> to vector<2x256xbf16>
    %100 = vector.extract_strided_slice %23 {offsets = [0, 4], sizes = [2, 1], strides = [1, 1]} : vector<2x5xi32> to vector<2x1xi32>
    %c20_i32 = arith.constant 20 : i32
    %101 = vector.broadcast %c20_i32 : i32 to vector<2x1xi32>
    %102 = arith.addi %100, %101 : vector<2x1xi32>
    %103 = vector.broadcast %102 : vector<2x1xi32> to vector<2x32xi32>
    %104 = arith.cmpi eq, %27, %103 : vector<2x32xi32>
    %105 = arith.extui %104 : vector<2x32xi1> to vector<2x32xi32>
    %106 = arith.sitofp %105 : vector<2x32xi32> to vector<2x32xf32>
    %107 = arith.truncf %106 : vector<2x32xf32> to vector<2x32xbf16>
    %cst_41 = arith.constant dense<0.000000e+00> : vector<2x512xf32>
    %108 = tpu.matmul %107, %24, %cst_41 {dimension_numbers = #tpu.dot_dimension_numbers<[1], [0], [0], [1], [0, 0, 1, 1], [], []>} : vector<2x32xbf16>, vector<32x512xbf16>, vector<2x512xf32> -> vector<2x512xf32>
    %cst_42 = arith.constant 0.000000e+00 : f32
    %109 = vector.broadcast %cst_42 : f32 to vector<2x512xf32>
    %110 = arith.maximumf %108, %109 : vector<2x512xf32>
    %111 = arith.truncf %110 : vector<2x512xf32> to vector<2x512xbf16>
    %cst_43 = arith.constant dense<0.000000e+00> : vector<2x256xf32>
    %112 = tpu.matmul %111, %25, %cst_43 {dimension_numbers = #tpu.dot_dimension_numbers<[1], [0], [0], [1], [0, 0, 1, 1], [], []>} : vector<2x512xbf16>, vector<512x256xbf16>, vector<2x256xf32> -> vector<2x256xf32>
    %113 = vector.broadcast %26 : vector<1x256xf32> to vector<2x256xf32>
    %114 = arith.addf %112, %113 : vector<2x256xf32>
    %cst_44 = arith.constant 0.000000e+00 : f32
    %115 = vector.broadcast %cst_44 : f32 to vector<2x256xf32>
    %116 = arith.maximumf %114, %115 : vector<2x256xf32>
    %117 = arith.truncf %116 : vector<2x256xf32> to vector<2x256xbf16>
    %c128 = arith.constant 128 : index
    %c0_45 = arith.constant 0 : index
    %118 = vector.load %arg10[%c128, %c0_45] : memref<1408x2xbf16, #tpu.memory_space<vmem>>, vector<256x2xbf16>
    %cst_46 = arith.constant dense<0.000000e+00> : vector<2x2xf32>
    %119 = tpu.matmul %45, %118, %cst_46 {dimension_numbers = #tpu.dot_dimension_numbers<[1], [0], [0], [1], [0, 0, 1, 1], [], []>} : vector<2x256xbf16>, vector<256x2xbf16>, vector<2x2xf32> -> vector<2x2xf32>
    %120 = arith.addf %22, %119 : vector<2x2xf32>
    %c384 = arith.constant 384 : index
    %c0_47 = arith.constant 0 : index
    %121 = vector.load %arg10[%c384, %c0_47] : memref<1408x2xbf16, #tpu.memory_space<vmem>>, vector<256x2xbf16>
    %cst_48 = arith.constant dense<0.000000e+00> : vector<2x2xf32>
    %122 = tpu.matmul %63, %121, %cst_48 {dimension_numbers = #tpu.dot_dimension_numbers<[1], [0], [0], [1], [0, 0, 1, 1], [], []>} : vector<2x256xbf16>, vector<256x2xbf16>, vector<2x2xf32> -> vector<2x2xf32>
    %123 = arith.addf %120, %122 : vector<2x2xf32>
    %c640 = arith.constant 640 : index
    %c0_49 = arith.constant 0 : index
    %124 = vector.load %arg10[%c640, %c0_49] : memref<1408x2xbf16, #tpu.memory_space<vmem>>, vector<256x2xbf16>
    %cst_50 = arith.constant dense<0.000000e+00> : vector<2x2xf32>
    %125 = tpu.matmul %81, %124, %cst_50 {dimension_numbers = #tpu.dot_dimension_numbers<[1], [0], [0], [1], [0, 0, 1, 1], [], []>} : vector<2x256xbf16>, vector<256x2xbf16>, vector<2x2xf32> -> vector<2x2xf32>
    %126 = arith.addf %123, %125 : vector<2x2xf32>
    %c896 = arith.constant 896 : index
    %c0_51 = arith.constant 0 : index
    %127 = vector.load %arg10[%c896, %c0_51] : memref<1408x2xbf16, #tpu.memory_space<vmem>>, vector<256x2xbf16>
    %cst_52 = arith.constant dense<0.000000e+00> : vector<2x2xf32>
    %128 = tpu.matmul %99, %127, %cst_52 {dimension_numbers = #tpu.dot_dimension_numbers<[1], [0], [0], [1], [0, 0, 1, 1], [], []>} : vector<2x256xbf16>, vector<256x2xbf16>, vector<2x2xf32> -> vector<2x2xf32>
    %129 = arith.addf %126, %128 : vector<2x2xf32>
    %c1152 = arith.constant 1152 : index
    %c0_53 = arith.constant 0 : index
    %130 = vector.load %arg10[%c1152, %c0_53] : memref<1408x2xbf16, #tpu.memory_space<vmem>>, vector<256x2xbf16>
    %cst_54 = arith.constant dense<0.000000e+00> : vector<2x2xf32>
    %131 = tpu.matmul %117, %130, %cst_54 {dimension_numbers = #tpu.dot_dimension_numbers<[1], [0], [0], [1], [0, 0, 1, 1], [], []>} : vector<2x256xbf16>, vector<256x2xbf16>, vector<2x2xf32> -> vector<2x2xf32>
    %132 = arith.addf %129, %131 : vector<2x2xf32>
    %c0_55 = arith.constant 0 : index
    %c0_56 = arith.constant 0 : index
    %133 = vector.load %arg11[%c0_55, %c0_56] : memref<1x2xf32, #tpu.memory_space<vmem>>, vector<1x2xf32>
    %134 = vector.broadcast %133 : vector<1x2xf32> to vector<2x2xf32>
    %135 = arith.addf %132, %134 : vector<2x2xf32>
    %c0_57 = arith.constant 0 : index
    %c0_58 = arith.constant 0 : index
    %136 = vector.load %arg12[%c0_57, %c0_58] : memref<2x2xf32, #tpu.memory_space<vmem>>, vector<2x2xf32>
    tpu.vector_store %arg12[%c0_57, %c0_58], %135 {strides = array<i32>} : memref<2x2xf32, #tpu.memory_space<vmem>>, vector<2x2xf32>,
    return
  }
  func.func @transform_0(%arg0: i32) -> (i32, i32) {
    %c0_i32 = arith.constant 0 : i32
    %c0_i32_0 = arith.constant 0 : i32
    return %arg0, %c0_i32 : i32, i32
  }
  func.func @transform_1(%arg0: i32) -> (i32, i32) {
    %c0_i32 = arith.constant 0 : i32
    %c0_i32_0 = arith.constant 0 : i32
    %c0_i32_1 = arith.constant 0 : i32
    return %c0_i32, %c0_i32_0 : i32, i32
  }
  func.func @transform_2(%arg0: i32) -> (i32, i32) {
    %c0_i32 = arith.constant 0 : i32
    %c0_i32_0 = arith.constant 0 : i32
    %c0_i32_1 = arith.constant 0 : i32
    return %c0_i32, %c0_i32_0 : i32, i32
  }
  func.func @transform_3(%arg0: i32) -> (i32, i32) {
    %c0_i32 = arith.constant 0 : i32
    %c0_i32_0 = arith.constant 0 : i32
    %c0_i32_1 = arith.constant 0 : i32
    return %c0_i32, %c0_i32_0 : i32, i32
  }
  func.func @transform_4(%arg0: i32) -> (i32, i32) {
    %c0_i32 = arith.constant 0 : i32
    %c0_i32_0 = arith.constant 0 : i32
    %c0_i32_1 = arith.constant 0 : i32
    return %c0_i32, %c0_i32_0 : i32, i32
  }
  func.func @transform_5(%arg0: i32) -> (i32, i32) {
    %c0_i32 = arith.constant 0 : i32
    %c0_i32_0 = arith.constant 0 : i32
    return %arg0, %c0_i32 : i32, i32
  }
  func.func @transform_6(%arg0: i32) -> (i32, i32) {
    %c0_i32 = arith.constant 0 : i32
    %c0_i32_0 = arith.constant 0 : i32
    %c0_i32_1 = arith.constant 0 : i32
    return %c0_i32, %c0_i32_0 : i32, i32
  }
  func.func @transform_7(%arg0: i32) -> (i32, i32) {
    %c0_i32 = arith.constant 0 : i32
    %c0_i32_0 = arith.constant 0 : i32
    %c0_i32_1 = arith.constant 0 : i32
    return %c0_i32, %c0_i32_0 : i32, i32
  }
  func.func @transform_8(%arg0: i32) -> (i32, i32) {
    %c0_i32 = arith.constant 0 : i32
    %c0_i32_0 = arith.constant 0 : i32
    %c0_i32_1 = arith.constant 0 : i32
    return %c0_i32, %c0_i32_0 : i32, i32
  }
  func.func @transform_9(%arg0: i32) -> (i32, i32) {
    %c0_i32 = arith.constant 0 : i32
    %c0_i32_0 = arith.constant 0 : i32
    %c0_i32_1 = arith.constant 0 : i32
    return %c0_i32, %c0_i32_0 : i32, i32
  }
  func.func @transform_10(%arg0: i32) -> (i32, i32) {
    %c0_i32 = arith.constant 0 : i32
    %c0_i32_0 = arith.constant 0 : i32
    %c0_i32_1 = arith.constant 0 : i32
    return %c0_i32, %c0_i32_0 : i32, i32
  }
  func.func @transform_11(%arg0: i32) -> (i32, i32) {
    %c0_i32 = arith.constant 0 : i32
    %c0_i32_0 = arith.constant 0 : i32
    return %arg0, %c0_i32 : i32, i32
  }
}

</mosaic_0001>

<llo_original>
// kernel: forward.1
$region0: #{forward.1}
  #allocation0 [shape = 'u32[]', space=smem, size = 0x4, offset = 0x4, fixed_abs, tag = 'smem constant byte address 0x4 - core index']
  #allocation1 [shape = 'u32[72,128]{1,0:T(1,128)}', space=vmem, size = 0x9000, scoped, tag = 'internal scratch']
  %s0 = inlined_call_operand.vmem [shape: bf16[512,32], index: 0, kind: input, shape index: {}]
  %s1 = inlined_call_operand.vmem [shape: bf16[32,128], index: 1, kind: input, shape index: {}]
  %s2 = inlined_call_operand.vmem [shape: f32[1,128], index: 2, kind: input, shape index: {}]
  %s3 = inlined_call_operand.vmem [shape: bf16[128,128], index: 3, kind: input, shape index: {}]
  %s4 = inlined_call_operand.vmem [shape: f32[1,128], index: 4, kind: input, shape index: {}]
  %s5 = inlined_call_operand.vmem [shape: s32[2,5], index: 5, kind: input, shape index: {}]
  %s6 = inlined_call_operand.vmem [shape: bf16[32,512], index: 6, kind: input, shape index: {}]
  %s7 = inlined_call_operand.vmem [shape: bf16[512,256], index: 7, kind: input, shape index: {}]
  %s8 = inlined_call_operand.vmem [shape: f32[1,256], index: 8, kind: input, shape index: {}]
  %s9 = inlined_call_operand.vmem [shape: bf16[1408,2], index: 9, kind: input, shape index: {}]
  %s10 = inlined_call_operand.vmem [shape: f32[1,2], index: 10, kind: input, shape index: {}]
  %s11 = inlined_call_operand.hbm [shape: f32[2,2], index: 11, kind: output, shape index: {}]
  %s12 = sld [smem:[#allocation0]]
  $region54: #{forward.1} parent=0
    _
  %s14 = ssub.s32 1, %s12
  %s15 = scalar_select 0, %s14, %s12
  $region1: #{forward.1} parent=0
    #allocation2 [shape = 'u8[1024]{0}', space=vmem, size = 0x400, scoped, tag = 'output window, operand 0, single buffered']
    #allocation3 [shape = 's32[1]{0}', space=sflag, size = 0x4, scoped, tag = 'scoped memory for forward.1']
    %16 = vsyncpa [#allocation3], 0
    // Predicated region
    $region2: #{forward.1} parent=1 // pred_check
      _
    $region3: #{forward.1} parent=1 // pred_check_branch
      %18 = sbr.rel (0) target = $region5
    $region4: #{forward.1} parent=1 // pred_region
      _
    $region5: #{forward.1} parent=1 // pred_fallthru
      _
    // Predicated region
    $region6: #{forward.1} parent=1 // pred_check
      _
    $region7: #{forward.1} parent=1 // pred_check_branch
      %20 = sbr.rel (0) target = $region9
    $region8: #{forward.1} parent=1 // pred_region
      _
    $region9: #{forward.1} parent=1 // pred_fallthru
      _
    // Predicated region
    $region10: #{forward.1} parent=1 // pred_check
      _
    $region11: #{forward.1} parent=1 // pred_check_branch
      %22 = sbr.rel (0) target = $region13
    $region12: #{forward.1} parent=1 // pred_region
      _
    $region13: #{forward.1} parent=1 // pred_fallthru
      _
    // Predicated region
    $region14: #{forward.1} parent=1 // pred_check
      _
    $region15: #{forward.1} parent=1 // pred_check_branch
      %24 = sbr.rel (0) target = $region17
    $region16: #{forward.1} parent=1 // pred_region
      _
    $region17: #{forward.1} parent=1 // pred_fallthru
      _
    // Predicated region
    $region18: #{forward.1} parent=1 // pred_check
      _
    $region19: #{forward.1} parent=1 // pred_check_branch
      %26 = sbr.rel (0) target = $region21
    $region20: #{forward.1} parent=1 // pred_region
      _
    $region21: #{forward.1} parent=1 // pred_fallthru
      _
    // Predicated region
    $region22: #{forward.1} parent=1 // pred_check
      _
    $region23: #{forward.1} parent=1 // pred_check_branch
      %28 = sbr.rel (0) target = $region25
    $region24: #{forward.1} parent=1 // pred_region
      _
    $region25: #{forward.1} parent=1 // pred_fallthru
      _
    // Predicated region
    $region26: #{forward.1} parent=1 // pred_check
      _
    $region27: #{forward.1} parent=1 // pred_check_branch
      %30 = sbr.rel (0) target = $region29
    $region28: #{forward.1} parent=1 // pred_region
      _
    $region29: #{forward.1} parent=1 // pred_fallthru
      _
    // Predicated region
    $region30: #{forward.1} parent=1 // pred_check
      _
    $region31: #{forward.1} parent=1 // pred_check_branch
      %32 = sbr.rel (0) target = $region33
    $region32: #{forward.1} parent=1 // pred_region
      _
    $region33: #{forward.1} parent=1 // pred_fallthru
      _
    // Predicated region
    $region34: #{forward.1} parent=1 // pred_check
      _
    $region35: #{forward.1} parent=1 // pred_check_branch
      %34 = sbr.rel (0) target = $region37
    $region36: #{forward.1} parent=1 // pred_region
      _
    $region37: #{forward.1} parent=1 // pred_fallthru
      _
    // Predicated region
    $region38: #{forward.1} parent=1 // pred_check
      _
    $region39: #{forward.1} parent=1 // pred_check_branch
      %36 = sbr.rel (0) target = $region41
    $region40: #{forward.1} parent=1 // pred_region
      _
    $region41: #{forward.1} parent=1 // pred_fallthru
      _
    // Predicated region
    $region42: #{forward.1} parent=1 // pred_check
      _
    $region43: #{forward.1} parent=1 // pred_check_branch
      %38 = sbr.rel (0) target = $region45
    $region44: #{forward.1} parent=1 // pred_region
      _
    $region45: #{forward.1} parent=1 // pred_fallthru
      _
    %v40 = vld [vmem:[%s0] sm:$0xf]
    %v41 = vld [vmem:[%s0 + $0x4] sm:$0xf]
    %v42 = vld [vmem:[%s0 + $0x8] sm:$0xf]
    %v43 = vld [vmem:[%s0 + $0xc] sm:$0xf]
    %v44 = vld [vmem:[%s0 + $0x10] sm:$0xf]
    %v45 = vld [vmem:[%s0 + $0x14] sm:$0xf]
    %v46 = vld [vmem:[%s0 + $0x18] sm:$0xf]
    %v47 = vld [vmem:[%s0 + $0x1c] sm:$0xf]
    %v48 = vld [vmem:[%s0 + $0x20] sm:$0xf]
    %v49 = vld [vmem:[%s0 + $0x24] sm:$0xf]
    %v50 = vld [vmem:[%s0 + $0x28] sm:$0xf]
    %v51 = vld [vmem:[%s0 + $0x2c] sm:$0xf]
    %v52 = vld [vmem:[%s0 + $0x30] sm:$0xf]
    %v53 = vld [vmem:[%s0 + $0x34] sm:$0xf]
    %v54 = vld [vmem:[%s0 + $0x38] sm:$0xf]
    %v55 = vld [vmem:[%s0 + $0x3c] sm:$0xf]
    %v56 = vld [vmem:[%s0 + $0x40] sm:$0xf]
    %v57 = vld [vmem:[%s0 + $0x44] sm:$0xf]
    %v58 = vld [vmem:[%s0 + $0x48] sm:$0xf]
    %v59 = vld [vmem:[%s0 + $0x4c] sm:$0xf]
    %v60 = vld [vmem:[%s0 + $0x50] sm:$0xf]
    %v61 = vld [vmem:[%s0 + $0x54] sm:$0xf]
    %v62 = vld [vmem:[%s0 + $0x58] sm:$0xf]
    %v63 = vld [vmem:[%s0 + $0x5c] sm:$0xf]
    %v64 = vld [vmem:[%s0 + $0x60] sm:$0xf]
    %v65 = vld [vmem:[%s0 + $0x64] sm:$0xf]
    %v66 = vld [vmem:[%s0 + $0x68] sm:$0xf]
    %v67 = vld [vmem:[%s0 + $0x6c] sm:$0xf]
    %v68 = vld [vmem:[%s0 + $0x70] sm:$0xf]
    %v69 = vld [vmem:[%s0 + $0x74] sm:$0xf]
    %v70 = vld [vmem:[%s0 + $0x78] sm:$0xf]
    %v71 = vld [vmem:[%s0 + $0x7c] sm:$0xf]
    %v72 = vld [vmem:[%s0 + $0x80] sm:$0xf]
    %v73 = vld [vmem:[%s0 + $0x84] sm:$0xf]
    %v74 = vld [vmem:[%s0 + $0x88] sm:$0xf]
    %v75 = vld [vmem:[%s0 + $0x8c] sm:$0xf]
    %v76 = vld [vmem:[%s0 + $0x90] sm:$0xf]
    %v77 = vld [vmem:[%s0 + $0x94] sm:$0xf]
    %v78 = vld [vmem:[%s0 + $0x98] sm:$0xf]
    %v79 = vld [vmem:[%s0 + $0x9c] sm:$0xf]
    %v80 = vld [vmem:[%s0 + $0xa0] sm:$0xf]
    %v81 = vld [vmem:[%s0 + $0xa4] sm:$0xf]
    %v82 = vld [vmem:[%s0 + $0xa8] sm:$0xf]
    %v83 = vld [vmem:[%s0 + $0xac] sm:$0xf]
    %v84 = vld [vmem:[%s0 + $0xb0] sm:$0xf]
    %v85 = vld [vmem:[%s0 + $0xb4] sm:$0xf]
    %v86 = vld [vmem:[%s0 + $0xb8] sm:$0xf]
    %v87 = vld [vmem:[%s0 + $0xbc] sm:$0xf]
    %v88 = vld [vmem:[%s0 + $0xc0] sm:$0xf]
    %v89 = vld [vmem:[%s0 + $0xc4] sm:$0xf]
    %v90 = vld [vmem:[%s0 + $0xc8] sm:$0xf]
    %v91 = vld [vmem:[%s0 + $0xcc] sm:$0xf]
    %v92 = vld [vmem:[%s0 + $0xd0] sm:$0xf]
    %v93 = vld [vmem:[%s0 + $0xd4] sm:$0xf]
    %v94 = vld [vmem:[%s0 + $0xd8] sm:$0xf]
    %v95 = vld [vmem:[%s0 + $0xdc] sm:$0xf]
    %v96 = vld [vmem:[%s0 + $0xe0] sm:$0xf]
    %v97 = vld [vmem:[%s0 + $0xe4] sm:$0xf]
    %v98 = vld [vmem:[%s0 + $0xe8] sm:$0xf]
    %v99 = vld [vmem:[%s0 + $0xec] sm:$0xf]
    %v100 = vld [vmem:[%s0 + $0xf0] sm:$0xf]
    %v101 = vld [vmem:[%s0 + $0xf4] sm:$0xf]
    %v102 = vld [vmem:[%s0 + $0xf8] sm:$0xf]
    %v103 = vld [vmem:[%s0 + $0xfc] sm:$0xf]
    %v104 = vld [vmem:[%s1] sm:$0xf]
    %v105 = vld [vmem:[%s1 + $0x4] sm:$0xf]
    %v106 = vld [vmem:[%s1 + $0x8] sm:$0xf]
    %v107 = vld [vmem:[%s1 + $0xc] sm:$0xf]
    %v108 = vld [vmem:[%s2] sm:$0x1]
    %v110 = vperm.slane %v108, 0
    %v176 = vunpack.c.l.b16 %v40
    %v177 = vunpack.c.l.b16 %v41
    %v178 = vunpack.c.l.b16 %v42
    %v179 = vunpack.c.l.b16 %v43
    %v180 = vunpack.c.l.b16 %v44
    %v181 = vunpack.c.l.b16 %v45
    %v182 = vunpack.c.l.b16 %v46
    %v183 = vunpack.c.l.b16 %v47
    %v184 = vunpack.c.l.b16 %v48
    %v185 = vunpack.c.l.b16 %v49
    %v186 = vunpack.c.l.b16 %v50
    %v187 = vunpack.c.l.b16 %v51
    %v188 = vunpack.c.l.b16 %v52
    %v189 = vunpack.c.l.b16 %v53
    %v190 = vunpack.c.l.b16 %v54
    %v191 = vunpack.c.l.b16 %v55
    %v192 = vunpack.c.l.b16 %v56
    %v193 = vunpack.c.l.b16 %v57
    %v194 = vunpack.c.l.b16 %v58
    %v195 = vunpack.c.l.b16 %v59
    %v196 = vunpack.c.l.b16 %v60
    %v197 = vunpack.c.l.b16 %v61
    %v198 = vunpack.c.l.b16 %v62
    %v199 = vunpack.c.l.b16 %v63
    %v200 = vunpack.c.l.b16 %v64
    %v201 = vunpack.c.l.b16 %v65
    %v202 = vunpack.c.l.b16 %v66
    %v203 = vunpack.c.l.b16 %v67
    %v204 = vunpack.c.l.b16 %v68
    %v205 = vunpack.c.l.b16 %v69
    %v206 = vunpack.c.l.b16 %v70
    %v207 = vunpack.c.l.b16 %v71
    %v208 = vunpack.c.l.b16 %v72
    %v209 = vunpack.c.l.b16 %v73
    %v210 = vunpack.c.l.b16 %v74
    %v211 = vunpack.c.l.b16 %v75
    %v212 = vunpack.c.l.b16 %v76
    %v213 = vunpack.c.l.b16 %v77
    %v214 = vunpack.c.l.b16 %v78
    %v215 = vunpack.c.l.b16 %v79
    %v216 = vunpack.c.l.b16 %v80
    %v217 = vunpack.c.l.b16 %v81
    %v218 = vunpack.c.l.b16 %v82
    %v219 = vunpack.c.l.b16 %v83
    %v220 = vunpack.c.l.b16 %v84
    %v221 = vunpack.c.l.b16 %v85
    %v222 = vunpack.c.l.b16 %v86
    %v223 = vunpack.c.l.b16 %v87
    %v224 = vunpack.c.l.b16 %v88
    %v225 = vunpack.c.l.b16 %v89
    %v226 = vunpack.c.l.b16 %v90
    %v227 = vunpack.c.l.b16 %v91
    %v228 = vunpack.c.l.b16 %v92
    %v229 = vunpack.c.l.b16 %v93
    %v230 = vunpack.c.l.b16 %v94
    %v231 = vunpack.c.l.b16 %v95
    %v232 = vunpack.c.l.b16 %v96
    %v233 = vunpack.c.l.b16 %v97
    %v234 = vunpack.c.l.b16 %v98
    %v235 = vunpack.c.l.b16 %v99
    %v236 = vunpack.c.l.b16 %v100
    %v237 = vunpack.c.l.b16 %v101
    %v238 = vunpack.c.l.b16 %v102
    %v239 = vunpack.c.l.b16 %v103
    %v240 = vpack.c.b16 %v177, %v176
    %v241 = vpack.c.b16 %v179, %v178
    %v242 = vpack.c.b16 %v181, %v180
    %v243 = vpack.c.b16 %v183, %v182
    %v244 = vpack.c.b16 %v185, %v184
    %v245 = vpack.c.b16 %v187, %v186
    %v246 = vpack.c.b16 %v189, %v188
    %v247 = vpack.c.b16 %v191, %v190
    %v248 = vpack.c.b16 %v193, %v192
    %v249 = vpack.c.b16 %v195, %v194
    %v250 = vpack.c.b16 %v197, %v196
    %v251 = vpack.c.b16 %v199, %v198
    %v252 = vpack.c.b16 %v201, %v200
    %v253 = vpack.c.b16 %v203, %v202
    %v254 = vpack.c.b16 %v205, %v204
    %v255 = vpack.c.b16 %v207, %v206
    %v256 = vpack.c.b16 %v209, %v208
    %v257 = vpack.c.b16 %v211, %v210
    %v258 = vpack.c.b16 %v213, %v212
    %v259 = vpack.c.b16 %v215, %v214
    %v260 = vpack.c.b16 %v217, %v216
    %v261 = vpack.c.b16 %v219, %v218
    %v262 = vpack.c.b16 %v221, %v220
    %v263 = vpack.c.b16 %v223, %v222
    %v264 = vpack.c.b16 %v225, %v224
    %v265 = vpack.c.b16 %v227, %v226
    %v266 = vpack.c.b16 %v229, %v228
    %v267 = vpack.c.b16 %v231, %v230
    %v268 = vpack.c.b16 %v233, %v232
    %v269 = vpack.c.b16 %v235, %v234
    %v270 = vpack.c.b16 %v237, %v236
    %v271 = vpack.c.b16 %v239, %v238
    %v276 = vunpack.c.l.b16 %v104
    %v277 = vunpack.c.l.b16 %v105
    %v278 = vunpack.c.l.b16 %v106
    %v279 = vunpack.c.l.b16 %v107
    %v280 = vpack.c.b16 %v277, %v276
    %v281 = vpack.c.b16 %v279, %v278
    %vm284 = vcmask 261120
    %v286 = vsel %vm284, %v240, 0
    %v289 = vsel %vm284, %v241, 0
    %v292 = vsel %vm284, %v242, 0
    %v295 = vsel %vm284, %v243, 0
    %v298 = vsel %vm284, %v244, 0
    %v301 = vsel %vm284, %v245, 0
    %v304 = vsel %vm284, %v246, 0
    %v307 = vsel %vm284, %v247, 0
    %v310 = vsel %vm284, %v248, 0
    %v313 = vsel %vm284, %v249, 0
    %v316 = vsel %vm284, %v250, 0
    %v319 = vsel %vm284, %v251, 0
    %v322 = vsel %vm284, %v252, 0
    %v325 = vsel %vm284, %v253, 0
    %v328 = vsel %vm284, %v254, 0
    %v331 = vsel %vm284, %v255, 0
    %v334 = vsel %vm284, %v256, 0
    %v337 = vsel %vm284, %v257, 0
    %v340 = vsel %vm284, %v258, 0
    %v343 = vsel %vm284, %v259, 0
    %v346 = vsel %vm284, %v260, 0
    %v349 = vsel %vm284, %v261, 0
    %v352 = vsel %vm284, %v262, 0
    %v355 = vsel %vm284, %v263, 0
    %v358 = vsel %vm284, %v264, 0
    %v361 = vsel %vm284, %v265, 0
    %v364 = vsel %vm284, %v266, 0
    %v367 = vsel %vm284, %v267, 0
    %v370 = vsel %vm284, %v268, 0
    %v373 = vsel %vm284, %v269, 0
    %v376 = vsel %vm284, %v270, 0
    %v379 = vsel %vm284, %v271, 0
    %381 = vmatpush.bf16.msra.mxu0 0
    %382 = vmatpush.bf16.msra.mxu0 0
    %383 = vmatpush.bf16.msra.mxu0 0
    %384 = vmatpush.bf16.msra.mxu0 0
    %385 = vmatpush.bf16.msra.mxu0 0
    %386 = vmatpush.bf16.msra.mxu0 0
    %387 = vmatpush.bf16.msra.mxu0 %v281
    %388 = vmatpush.bf16.msra.mxu0 %v280
    %389 = vmatmul.bf16.gmra.mxu0 %v286
    %v390 = vpop.f32.mrf.mxu0
    %v391 = vadd.f32 %v110, %v390
    %v392 = vpop.f32.mrf.mxu0
    %v393 = vadd.f32 %v110, %v392
    %394 = vmatmul.bf16.gmra.mxu0 %v289
    %v395 = vpop.f32.mrf.mxu0
    %v396 = vadd.f32 %v110, %v395
    %v397 = vpop.f32.mrf.mxu0
    %v398 = vadd.f32 %v110, %v397
    %399 = vmatmul.bf16.gmra.mxu0 %v292
    %v400 = vpop.f32.mrf.mxu0
    %v401 = vadd.f32 %v110, %v400
    %v402 = vpop.f32.mrf.mxu0
    %v403 = vadd.f32 %v110, %v402
    %404 = vmatmul.bf16.gmra.mxu0 %v295
    %v405 = vpop.f32.mrf.mxu0
    %v406 = vadd.f32 %v110, %v405
    %v407 = vpop.f32.mrf.mxu0
    %v408 = vadd.f32 %v110, %v407
    %409 = vmatmul.bf16.gmra.mxu0 %v298
    %v410 = vpop.f32.mrf.mxu0
    %v411 = vadd.f32 %v110, %v410
    %v412 = vpop.f32.mrf.mxu0
    %v413 = vadd.f32 %v110, %v412
    %414 = vmatmul.bf16.gmra.mxu0 %v301
    %v415 = vpop.f32.mrf.mxu0
    %v416 = vadd.f32 %v110, %v415
    %v417 = vpop.f32.mrf.mxu0
    %v418 = vadd.f32 %v110, %v417
    %419 = vmatmul.bf16.gmra.mxu0 %v304
    %v420 = vpop.f32.mrf.mxu0
    %v421 = vadd.f32 %v110, %v420
    %v422 = vpop.f32.mrf.mxu0
    %v423 = vadd.f32 %v110, %v422
    %424 = vmatmul.bf16.gmra.mxu0 %v307
    %v425 = vpop.f32.mrf.mxu0
    %v426 = vadd.f32 %v110, %v425
    %v427 = vpop.f32.mrf.mxu0
    %v428 = vadd.f32 %v110, %v427
    %429 = vmatmul.bf16.gmra.mxu0 %v310
    %v430 = vpop.f32.mrf.mxu0
    %v431 = vadd.f32 %v110, %v430
    %v432 = vpop.f32.mrf.mxu0
    %v433 = vadd.f32 %v110, %v432
    %434 = vmatmul.bf16.gmra.mxu0 %v313
    %v435 = vpop.f32.mrf.mxu0
    %v436 = vadd.f32 %v110, %v435
    %v437 = vpop.f32.mrf.mxu0
    %v438 = vadd.f32 %v110, %v437
    %439 = vmatmul.bf16.gmra.mxu0 %v316
    %v440 = vpop.f32.mrf.mxu0
    %v441 = vadd.f32 %v110, %v440
    %v442 = vpop.f32.mrf.mxu0
    %v443 = vadd.f32 %v110, %v442
    %444 = vmatmul.bf16.gmra.mxu0 %v319
    %v445 = vpop.f32.mrf.mxu0
    %v446 = vadd.f32 %v110, %v445
    %v447 = vpop.f32.mrf.mxu0
    %v448 = vadd.f32 %v110, %v447
    %449 = vmatmul.bf16.gmra.mxu0 %v322
    %v450 = vpop.f32.mrf.mxu0
    %v451 = vadd.f32 %v110, %v450
    %v452 = vpop.f32.mrf.mxu0
    %v453 = vadd.f32 %v110, %v452
    %454 = vmatmul.bf16.gmra.mxu0 %v325
    %v455 = vpop.f32.mrf.mxu0
    %v456 = vadd.f32 %v110, %v455
    %v457 = vpop.f32.mrf.mxu0
    %v458 = vadd.f32 %v110, %v457
    %459 = vmatmul.bf16.gmra.mxu0 %v328
    %v460 = vpop.f32.mrf.mxu0
    %v461 = vadd.f32 %v110, %v460
    %v462 = vpop.f32.mrf.mxu0
    %v463 = vadd.f32 %v110, %v462
    %464 = vmatmul.bf16.gmra.mxu0 %v331
    %v465 = vpop.f32.mrf.mxu0
    %v466 = vadd.f32 %v110, %v465
    %v467 = vpop.f32.mrf.mxu0
    %v468 = vadd.f32 %v110, %v467
    %469 = vmatmul.bf16.gmra.mxu0 %v334
    %v470 = vpop.f32.mrf.mxu0
    %v471 = vadd.f32 %v110, %v470
    %v472 = vpop.f32.mrf.mxu0
    %v473 = vadd.f32 %v110, %v472
    %474 = vmatmul.bf16.gmra.mxu0 %v337
    %v475 = vpop.f32.mrf.mxu0
    %v476 = vadd.f32 %v110, %v475
    %v477 = vpop.f32.mrf.mxu0
    %v478 = vadd.f32 %v110, %v477
    %479 = vmatmul.bf16.gmra.mxu0 %v340
    %v480 = vpop.f32.mrf.mxu0
    %v481 = vadd.f32 %v110, %v480
    %v482 = vpop.f32.mrf.mxu0
    %v483 = vadd.f32 %v110, %v482
    %484 = vmatmul.bf16.gmra.mxu0 %v343
    %v485 = vpop.f32.mrf.mxu0
    %v486 = vadd.f32 %v110, %v485
    %v487 = vpop.f32.mrf.mxu0
    %v488 = vadd.f32 %v110, %v487
    %489 = vmatmul.bf16.gmra.mxu0 %v346
    %v490 = vpop.f32.mrf.mxu0
    %v491 = vadd.f32 %v110, %v490
    %v492 = vpop.f32.mrf.mxu0
    %v493 = vadd.f32 %v110, %v492
    %494 = vmatmul.bf16.gmra.mxu0 %v349
    %v495 = vpop.f32.mrf.mxu0
    %v496 = vadd.f32 %v110, %v495
    %v497 = vpop.f32.mrf.mxu0
    %v498 = vadd.f32 %v110, %v497
    %499 = vmatmul.bf16.gmra.mxu0 %v352
    %v500 = vpop.f32.mrf.mxu0
    %v501 = vadd.f32 %v110, %v500
    %v502 = vpop.f32.mrf.mxu0
    %v503 = vadd.f32 %v110, %v502
    %504 = vmatmul.bf16.gmra.mxu0 %v355
    %v505 = vpop.f32.mrf.mxu0
    %v506 = vadd.f32 %v110, %v505
    %v507 = vpop.f32.mrf.mxu0
    %v508 = vadd.f32 %v110, %v507
    %509 = vmatmul.bf16.gmra.mxu0 %v358
    %v510 = vpop.f32.mrf.mxu0
    %v511 = vadd.f32 %v110, %v510
    %v512 = vpop.f32.mrf.mxu0
    %v513 = vadd.f32 %v110, %v512
    %514 = vmatmul.bf16.gmra.mxu0 %v361
    %v515 = vpop.f32.mrf.mxu0
    %v516 = vadd.f32 %v110, %v515
    %v517 = vpop.f32.mrf.mxu0
    %v518 = vadd.f32 %v110, %v517
    %519 = vmatmul.bf16.gmra.mxu0 %v364
    %v520 = vpop.f32.mrf.mxu0
    %v521 = vadd.f32 %v110, %v520
    %v522 = vpop.f32.mrf.mxu0
    %v523 = vadd.f32 %v110, %v522
    %524 = vmatmul.bf16.gmra.mxu0 %v367
    %v525 = vpop.f32.mrf.mxu0
    %v526 = vadd.f32 %v110, %v525
    %v527 = vpop.f32.mrf.mxu0
    %v528 = vadd.f32 %v110, %v527
    %529 = vmatmul.bf16.gmra.mxu0 %v370
    %v530 = vpop.f32.mrf.mxu0
    %v531 = vadd.f32 %v110, %v530
    %v532 = vpop.f32.mrf.mxu0
    %v533 = vadd.f32 %v110, %v532
    %534 = vmatmul.bf16.gmra.mxu0 %v373
    %v535 = vpop.f32.mrf.mxu0
    %v536 = vadd.f32 %v110, %v535
    %v537 = vpop.f32.mrf.mxu0
    %v538 = vadd.f32 %v110, %v537
    %539 = vmatmul.bf16.gmra.mxu0 %v376
    %v540 = vpop.f32.mrf.mxu0
    %v541 = vadd.f32 %v110, %v540
    %v542 = vpop.f32.mrf.mxu0
    %v543 = vadd.f32 %v110, %v542
    %544 = vmatmul.bf16.gmra.mxu0 %v379
    %v545 = vpop.f32.mrf.mxu0
    %v546 = vadd.f32 %v110, %v545
    %v547 = vpop.f32.mrf.mxu0
    %v548 = vadd.f32 %v110, %v547
    %549 = vdwg.mxu0
    %v550 = vmax.f32 %v391, 0.0
    %v551 = vmax.f32 %v393, 0.0
    %v552 = vmax.f32 %v396, 0.0
    %v553 = vmax.f32 %v398, 0.0
    %v554 = vmax.f32 %v401, 0.0
    %v555 = vmax.f32 %v403, 0.0
    %v556 = vmax.f32 %v406, 0.0
    %v557 = vmax.f32 %v408, 0.0
    %v558 = vmax.f32 %v411, 0.0
    %v559 = vmax.f32 %v413, 0.0
    %v560 = vmax.f32 %v416, 0.0
    %v561 = vmax.f32 %v418, 0.0
    %v562 = vmax.f32 %v421, 0.0
    %v563 = vmax.f32 %v423, 0.0
    %v564 = vmax.f32 %v426, 0.0
    %v565 = vmax.f32 %v428, 0.0
    %v566 = vmax.f32 %v431, 0.0
    %v567 = vmax.f32 %v433, 0.0
    %v568 = vmax.f32 %v436, 0.0
    %v569 = vmax.f32 %v438, 0.0
    %v570 = vmax.f32 %v441, 0.0
    %v571 = vmax.f32 %v443, 0.0
    %v572 = vmax.f32 %v446, 0.0
    %v573 = vmax.f32 %v448, 0.0
    %v574 = vmax.f32 %v451, 0.0
    %v575 = vmax.f32 %v453, 0.0
    %v576 = vmax.f32 %v456, 0.0
    %v577 = vmax.f32 %v458, 0.0
    %v578 = vmax.f32 %v461, 0.0
    %v579 = vmax.f32 %v463, 0.0
    %v580 = vmax.f32 %v466, 0.0
    %v581 = vmax.f32 %v468, 0.0
    %v582 = vmax.f32 %v471, 0.0
    %v583 = vmax.f32 %v473, 0.0
    %v584 = vmax.f32 %v476, 0.0
    %v585 = vmax.f32 %v478, 0.0
    %v586 = vmax.f32 %v481, 0.0
    %v587 = vmax.f32 %v483, 0.0
    %v588 = vmax.f32 %v486, 0.0
    %v589 = vmax.f32 %v488, 0.0
    %v590 = vmax.f32 %v491, 0.0
    %v591 = vmax.f32 %v493, 0.0
    %v592 = vmax.f32 %v496, 0.0
    %v593 = vmax.f32 %v498, 0.0
    %v594 = vmax.f32 %v501, 0.0
    %v595 = vmax.f32 %v503, 0.0
    %v596 = vmax.f32 %v506, 0.0
    %v597 = vmax.f32 %v508, 0.0
    %v598 = vmax.f32 %v511, 0.0
    %v599 = vmax.f32 %v513, 0.0
    %v600 = vmax.f32 %v516, 0.0
    %v601 = vmax.f32 %v518, 0.0
    %v602 = vmax.f32 %v521, 0.0
    %v603 = vmax.f32 %v523, 0.0
    %v604 = vmax.f32 %v526, 0.0
    %v605 = vmax.f32 %v528, 0.0
    %v606 = vmax.f32 %v531, 0.0
    %v607 = vmax.f32 %v533, 0.0
    %v608 = vmax.f32 %v536, 0.0
    %v609 = vmax.f32 %v538, 0.0
    %v610 = vmax.f32 %v541, 0.0
    %v611 = vmax.f32 %v543, 0.0
    %v612 = vmax.f32 %v546, 0.0
    %v613 = vmax.f32 %v548, 0.0
    %v614 = vadd.f32 %v550, %v551
    %v615 = vadd.f32 %v614, %v552
    %v616 = vadd.f32 %v615, %v553
    %v617 = vadd.f32 %v616, %v554
    %v618 = vadd.f32 %v617, %v555
    %v619 = vadd.f32 %v618, %v556
    %v620 = vadd.f32 %v619, %v557
    %v621 = vadd.f32 %v620, %v558
    %v622 = vadd.f32 %v621, %v559
    %v623 = vadd.f32 %v622, %v560
    %v624 = vadd.f32 %v623, %v561
    %v625 = vadd.f32 %v624, %v562
    %v626 = vadd.f32 %v625, %v563
    %v627 = vadd.f32 %v626, %v564
    %v628 = vadd.f32 %v627, %v565
    %v629 = vadd.f32 %v628, %v566
    %v630 = vadd.f32 %v629, %v567
    %v631 = vadd.f32 %v630, %v568
    %v632 = vadd.f32 %v631, %v569
    %v633 = vadd.f32 %v632, %v570
    %v634 = vadd.f32 %v633, %v571
    %v635 = vadd.f32 %v634, %v572
    %v636 = vadd.f32 %v635, %v573
    %v637 = vadd.f32 %v636, %v574
    %v638 = vadd.f32 %v637, %v575
    %v639 = vadd.f32 %v638, %v576
    %v640 = vadd.f32 %v639, %v577
    %v641 = vadd.f32 %v640, %v578
    %v642 = vadd.f32 %v641, %v579
    %v643 = vadd.f32 %v642, %v580
    %v644 = vadd.f32 %v643, %v581
    %v645 = vrot.slane %v644, 4
    %v646 = vadd.f32 %v644, %v645
    %v647 = vrot.slane %v646, 2
    %v648 = vadd.f32 %v646, %v647
    %v649 = vrot.slane %v648, 1
    %v650 = vadd.f32 %v648, %v649
    %v651 = vadd.f32 %v582, %v583
    %v652 = vadd.f32 %v651, %v584
    %v653 = vadd.f32 %v652, %v585
    %v654 = vadd.f32 %v653, %v586
    %v655 = vadd.f32 %v654, %v587
    %v656 = vadd.f32 %v655, %v588
    %v657 = vadd.f32 %v656, %v589
    %v658 = vadd.f32 %v657, %v590
    %v659 = vadd.f32 %v658, %v591
    %v660 = vadd.f32 %v659, %v592
    %v661 = vadd.f32 %v660, %v593
    %v662 = vadd.f32 %v661, %v594
    %v663 = vadd.f32 %v662, %v595
    %v664 = vadd.f32 %v663, %v596
    %v665 = vadd.f32 %v664, %v597
    %v666 = vadd.f32 %v665, %v598
    %v667 = vadd.f32 %v666, %v599
    %v668 = vadd.f32 %v667, %v600
    %v669 = vadd.f32 %v668, %v601
    %v670 = vadd.f32 %v669, %v602
    %v671 = vadd.f32 %v670, %v603
    %v672 = vadd.f32 %v671, %v604
    %v673 = vadd.f32 %v672, %v605
    %v674 = vadd.f32 %v673, %v606
    %v675 = vadd.f32 %v674, %v607
    %v676 = vadd.f32 %v675, %v608
    %v677 = vadd.f32 %v676, %v609
    %v678 = vadd.f32 %v677, %v610
    %v679 = vadd.f32 %v678, %v611
    %v680 = vadd.f32 %v679, %v612
    %v681 = vadd.f32 %v680, %v613
    %v682 = vrot.slane %v681, 4
    %v683 = vadd.f32 %v681, %v682
    %v684 = vrot.slane %v683, 2
    %v685 = vadd.f32 %v683, %v684
    %v686 = vrot.slane %v685, 1
    %v687 = vadd.f32 %v685, %v686
    %v688 = vmul.f32 %v650, 0.00390625
    %v689 = vmul.f32 %v687, 0.00390625
    %v690 = vpack.c.bf16 %v688, %v688
    %v691 = vpack.c.bf16 %v689, %v689
    %v692 = vld [vmem:[%s3] sm:$0xf]
    %v693 = vld [vmem:[%s3 + $0x4] sm:$0xf]
    %v694 = vld [vmem:[%s3 + $0x8] sm:$0xf]
    %v695 = vld [vmem:[%s3 + $0xc] sm:$0xf]
    %v696 = vld [vmem:[%s3 + $0x10] sm:$0xf]
    %v697 = vld [vmem:[%s3 + $0x14] sm:$0xf]
    %v698 = vld [vmem:[%s3 + $0x18] sm:$0xf]
    %v699 = vld [vmem:[%s3 + $0x1c] sm:$0xf]
    %v700 = vld [vmem:[%s3 + $0x20] sm:$0xf]
    %v701 = vld [vmem:[%s3 + $0x24] sm:$0xf]
    %v702 = vld [vmem:[%s3 + $0x28] sm:$0xf]
    %v703 = vld [vmem:[%s3 + $0x2c] sm:$0xf]
    %v704 = vld [vmem:[%s3 + $0x30] sm:$0xf]
    %v705 = vld [vmem:[%s3 + $0x34] sm:$0xf]
    %v706 = vld [vmem:[%s3 + $0x38] sm:$0xf]
    %v707 = vld [vmem:[%s3 + $0x3c] sm:$0xf]
    %v708 = vld [vmem:[%s4] sm:$0x1]
    %v710 = vperm.slane %v708, 0
    %v714 = vunpack.c.l.b16 %v690
    %v715 = vunpack.c.l.b16 %v691
    %vm716 = vcmask 1041409
    %v717 = vsel %vm716, %v715, %v714
    %v718 = vpack.c.b16 %v717, %v717
    %v736 = vunpack.c.l.b16 %v692
    %v737 = vunpack.c.l.b16 %v693
    %v738 = vunpack.c.l.b16 %v694
    %v739 = vunpack.c.l.b16 %v695
    %v740 = vunpack.c.l.b16 %v696
    %v741 = vunpack.c.l.b16 %v697
    %v742 = vunpack.c.l.b16 %v698
    %v743 = vunpack.c.l.b16 %v699
    %v744 = vunpack.c.l.b16 %v700
    %v745 = vunpack.c.l.b16 %v701
    %v746 = vunpack.c.l.b16 %v702
    %v747 = vunpack.c.l.b16 %v703
    %v748 = vunpack.c.l.b16 %v704
    %v749 = vunpack.c.l.b16 %v705
    %v750 = vunpack.c.l.b16 %v706
    %v751 = vunpack.c.l.b16 %v707
    %v752 = vpack.c.b16 %v737, %v736
    %v753 = vpack.c.b16 %v739, %v738
    %v754 = vpack.c.b16 %v741, %v740
    %v755 = vpack.c.b16 %v743, %v742
    %v756 = vpack.c.b16 %v745, %v744
    %v757 = vpack.c.b16 %v747, %v746
    %v758 = vpack.c.b16 %v749, %v748
    %v759 = vpack.c.b16 %v751, %v750
    %768 = vmatpush.bf16.msra.mxu0 %v759
    %769 = vmatpush.bf16.msra.mxu0 %v758
    %770 = vmatpush.bf16.msra.mxu0 %v757
    %771 = vmatpush.bf16.msra.mxu0 %v756
    %772 = vmatpush.bf16.msra.mxu0 %v755
    %773 = vmatpush.bf16.msra.mxu0 %v754
    %774 = vmatpush.bf16.msra.mxu0 %v753
    %775 = vmatpush.bf16.msra.mxu0 %v752
    %776 = vmatmul.bf16.gmra.mxu0 %v718
    %v777 = vpop.f32.mrf.mxu0
    %v778 = vadd.f32 %v710, %v777
    %v779 = vpop.f32.mrf.mxu0
    %780 = vdwg.mxu0
    %v781 = vmax.f32 %v778, 0.0
    %v782 = vpack.c.bf16 %v781, %v781
    %v783 = vld [vmem:[%s9] sm:$0xf]
    %v784 = vld [vmem:[%s9 + $0x4] sm:$0xf]
    %v785 = vld [vmem:[%s9 + $0x8] sm:$0xf]
    %v786 = vld [vmem:[%s9 + $0xc] sm:$0xf]
    %v787 = vld [vmem:[%s9 + $0x10] sm:$0xf]
    %v788 = vld [vmem:[%s9 + $0x14] sm:$0xf]
    %v789 = vld [vmem:[%s9 + $0x18] sm:$0xf]
    %v790 = vld [vmem:[%s9 + $0x1c] sm:$0xf]
    %v791 = vld [vmem:[%s9 + $0x20] sm:$0xf]
    %v792 = vld [vmem:[%s9 + $0x24] sm:$0xf]
    %v793 = vld [vmem:[%s9 + $0x28] sm:$0xf]
    %v794 = vld [vmem:[%s9 + $0x2c] sm:$0xf]
    %v795 = vld [vmem:[%s9 + $0x30] sm:$0xf]
    %v796 = vld [vmem:[%s9 + $0x34] sm:$0xf]
    %v797 = vld [vmem:[%s9 + $0x38] sm:$0xf]
    %v798 = vld [vmem:[%s9 + $0x3c] sm:$0xf]
    %v799 = vld [vmem:[%s5] sm:$0x3]
    %v800 = vld [vmem:[%s6] sm:$0xff]
    %v801 = vld [vmem:[%s6 + $0x8] sm:$0xff]
    %v802 = vld [vmem:[%s6 + $0x10] sm:$0xff]
    %v803 = vld [vmem:[%s6 + $0x18] sm:$0xff]
    %v804 = vld [vmem:[%s6 + $0x20] sm:$0xff]
    %v805 = vld [vmem:[%s6 + $0x28] sm:$0xff]
    %v806 = vld [vmem:[%s6 + $0x30] sm:$0xff]
    %v807 = vld [vmem:[%s6 + $0x38] sm:$0xff]
    %v808 = vld [vmem:[%s7] sm:$0xff]
    %v809 = vld [vmem:[%s7 + $0x8] sm:$0xff]
    %v810 = vld [vmem:[%s7 + $0x10] sm:$0xff]
    %v811 = vld [vmem:[%s7 + $0x18] sm:$0xff]
    %v812 = vld [vmem:[%s7 + $0x20] sm:$0xff]
    %v813 = vld [vmem:[%s7 + $0x28] sm:$0xff]
    %v814 = vld [vmem:[%s7 + $0x30] sm:$0xff]
    %v815 = vld [vmem:[%s7 + $0x38] sm:$0xff]
    %v816 = vld [vmem:[%s7 + $0x40] sm:$0xff]
    %v817 = vld [vmem:[%s7 + $0x48] sm:$0xff]
    %v818 = vld [vmem:[%s7 + $0x50] sm:$0xff]
    %v819 = vld [vmem:[%s7 + $0x58] sm:$0xff]
    %v820 = vld [vmem:[%s7 + $0x60] sm:$0xff]
    %v821 = vld [vmem:[%s7 + $0x68] sm:$0xff]
    %v822 = vld [vmem:[%s7 + $0x70] sm:$0xff]
    %v823 = vld [vmem:[%s7 + $0x78] sm:$0xff]
    %v824 = vld [vmem:[%s7 + $0x80] sm:$0xff]
    %v825 = vld [vmem:[%s7 + $0x88] sm:$0xff]
    %v826 = vld [vmem:[%s7 + $0x90] sm:$0xff]
    %v827 = vld [vmem:[%s7 + $0x98] sm:$0xff]
    %v828 = vld [vmem:[%s7 + $0xa0] sm:$0xff]
    %v829 = vld [vmem:[%s7 + $0xa8] sm:$0xff]
    %v830 = vld [vmem:[%s7 + $0xb0] sm:$0xff]
    %v831 = vld [vmem:[%s7 + $0xb8] sm:$0xff]
    %v832 = vld [vmem:[%s7 + $0xc0] sm:$0xff]
    %v833 = vld [vmem:[%s7 + $0xc8] sm:$0xff]
    %v834 = vld [vmem:[%s7 + $0xd0] sm:$0xff]
    %v835 = vld [vmem:[%s7 + $0xd8] sm:$0xff]
    %v836 = vld [vmem:[%s7 + $0xe0] sm:$0xff]
    %v837 = vld [vmem:[%s7 + $0xe8] sm:$0xff]
    %v838 = vld [vmem:[%s7 + $0xf0] sm:$0xff]
    %v839 = vld [vmem:[%s7 + $0xf8] sm:$0xff]
    %v840 = vld [vmem:[%s7 + $0x100] sm:$0xff]
    %v841 = vld [vmem:[%s7 + $0x108] sm:$0xff]
    %v842 = vld [vmem:[%s7 + $0x110] sm:$0xff]
    %v843 = vld [vmem:[%s7 + $0x118] sm:$0xff]
    %v844 = vld [vmem:[%s7 + $0x120] sm:$0xff]
    %v845 = vld [vmem:[%s7 + $0x128] sm:$0xff]
    %v846 = vld [vmem:[%s7 + $0x130] sm:$0xff]
    %v847 = vld [vmem:[%s7 + $0x138] sm:$0xff]
    %v848 = vld [vmem:[%s7 + $0x140] sm:$0xff]
    %v849 = vld [vmem:[%s7 + $0x148] sm:$0xff]
    %v850 = vld [vmem:[%s7 + $0x150] sm:$0xff]
    %v851 = vld [vmem:[%s7 + $0x158] sm:$0xff]
    %v852 = vld [vmem:[%s7 + $0x160] sm:$0xff]
    %v853 = vld [vmem:[%s7 + $0x168] sm:$0xff]
    %v854 = vld [vmem:[%s7 + $0x170] sm:$0xff]
    %v855 = vld [vmem:[%s7 + $0x178] sm:$0xff]
    %v856 = vld [vmem:[%s7 + $0x180] sm:$0xff]
    %v857 = vld [vmem:[%s7 + $0x188] sm:$0xff]
    %v858 = vld [vmem:[%s7 + $0x190] sm:$0xff]
    %v859 = vld [vmem:[%s7 + $0x198] sm:$0xff]
    %v860 = vld [vmem:[%s7 + $0x1a0] sm:$0xff]
    %v861 = vld [vmem:[%s7 + $0x1a8] sm:$0xff]
    %v862 = vld [vmem:[%s7 + $0x1b0] sm:$0xff]
    %v863 = vld [vmem:[%s7 + $0x1b8] sm:$0xff]
    %v864 = vld [vmem:[%s7 + $0x1c0] sm:$0xff]
    %v865 = vld [vmem:[%s7 + $0x1c8] sm:$0xff]
    %v866 = vld [vmem:[%s7 + $0x1d0] sm:$0xff]
    %v867 = vld [vmem:[%s7 + $0x1d8] sm:$0xff]
    %v868 = vld [vmem:[%s7 + $0x1e0] sm:$0xff]
    %v869 = vld [vmem:[%s7 + $0x1e8] sm:$0xff]
    %v870 = vld [vmem:[%s7 + $0x1f0] sm:$0xff]
    %v871 = vld [vmem:[%s7 + $0x1f8] sm:$0xff]
    %v872 = vld [vmem:[%s8] sm:$0x3]
    %v873 = vlaneseq
    %v874 = vand.u32 %v873, 127
    %875 = vset.pattern.permute.xlu0 0
    %876 = vperm.xlu0 %875, %v799
    %v877 = vpop.permute.xlu0 %876
    %vm878 = vcmp.eq.s32.totalorder %v874, %v877
    %v879 = vsel %vm878, 1, 0
    %v880 = vcvt.s32.f32 %v879
    %v881 = vpack.c.bf16 %v880, %v880
    %v890 = vunpack.c.l.b16 %v800
    %v891 = vunpack.c.h.b16 %v800
    %v892 = vunpack.c.l.b16 %v801
    %v893 = vunpack.c.h.b16 %v801
    %v894 = vunpack.c.l.b16 %v802
    %v895 = vunpack.c.h.b16 %v802
    %v896 = vunpack.c.l.b16 %v803
    %v897 = vunpack.c.h.b16 %v803
    %v898 = vunpack.c.l.b16 %v804
    %v899 = vunpack.c.h.b16 %v804
    %v900 = vunpack.c.l.b16 %v805
    %v901 = vunpack.c.h.b16 %v805
    %v902 = vunpack.c.l.b16 %v806
    %v903 = vunpack.c.h.b16 %v806
    %v904 = vunpack.c.l.b16 %v807
    %v905 = vunpack.c.h.b16 %v807
    %v906 = vpack.c.b16 %v894, %v890
    %v907 = vpack.c.b16 %v895, %v891
    %v908 = vpack.c.b16 %v896, %v892
    %v909 = vpack.c.b16 %v897, %v893
    %v910 = vpack.c.b16 %v902, %v898
    %v911 = vpack.c.b16 %v903, %v899
    %v912 = vpack.c.b16 %v904, %v900
    %v913 = vpack.c.b16 %v905, %v901
    %v923 = vsel %vm284, %v881, 0
    %925 = vmatpush.bf16.msra.mxu0 0
    %926 = vmatpush.bf16.msra.mxu0 0
    %927 = vmatpush.bf16.msra.mxu0 0
    %928 = vmatpush.bf16.msra.mxu0 0
    %929 = vmatpush.bf16.msra.mxu0 0
    %930 = vmatpush.bf16.msra.mxu0 0
    %931 = vmatpush.bf16.msra.mxu0 %v910
    %932 = vmatpush.bf16.msra.mxu0 %v906
    %933 = vmatmul.bf16.gmra.mxu0 %v923
    %v934 = vpop.f32.mrf.mxu0
    %v935 = vadd.f32 0.0, %v934
    %v936 = vpop.f32.mrf.mxu0
    %937 = vdwg.mxu0
    %938 = vmatpush.bf16.msra.mxu0 0
    %939 = vmatpush.bf16.msra.mxu0 0
    %940 = vmatpush.bf16.msra.mxu0 0
    %941 = vmatpush.bf16.msra.mxu0 0
    %942 = vmatpush.bf16.msra.mxu0 0
    %943 = vmatpush.bf16.msra.mxu0 0
    %944 = vmatpush.bf16.msra.mxu0 %v911
    %945 = vmatpush.bf16.msra.mxu0 %v907
    %946 = vmatmul.bf16.gmra.mxu0 %v923
    %v947 = vpop.f32.mrf.mxu0
    %v948 = vadd.f32 0.0, %v947
    %v949 = vpop.f32.mrf.mxu0
    %950 = vdwg.mxu0
    %951 = vmatpush.bf16.msra.mxu0 0
    %952 = vmatpush.bf16.msra.mxu0 0
    %953 = vmatpush.bf16.msra.mxu0 0
    %954 = vmatpush.bf16.msra.mxu0 0
    %955 = vmatpush.bf16.msra.mxu0 0
    %956 = vmatpush.bf16.msra.mxu0 0
    %957 = vmatpush.bf16.msra.mxu0 %v912
    %958 = vmatpush.bf16.msra.mxu0 %v908
    %959 = vmatmul.bf16.gmra.mxu0 %v923
    %v960 = vpop.f32.mrf.mxu0
    %v961 = vadd.f32 0.0, %v960
    %v962 = vpop.f32.mrf.mxu0
    %963 = vdwg.mxu0
    %964 = vmatpush.bf16.msra.mxu0 0
    %965 = vmatpush.bf16.msra.mxu0 0
    %966 = vmatpush.bf16.msra.mxu0 0
    %967 = vmatpush.bf16.msra.mxu0 0
    %968 = vmatpush.bf16.msra.mxu0 0
    %969 = vmatpush.bf16.msra.mxu0 0
    %970 = vmatpush.bf16.msra.mxu0 %v913
    %971 = vmatpush.bf16.msra.mxu0 %v909
    %972 = vmatmul.bf16.gmra.mxu0 %v923
    %v973 = vpop.f32.mrf.mxu0
    %v974 = vadd.f32 0.0, %v973
    %v975 = vpop.f32.mrf.mxu0
    %976 = vdwg.mxu0
    %v977 = vmax.f32 %v935, 0.0
    %v978 = vmax.f32 %v948, 0.0
    %v979 = vmax.f32 %v961, 0.0
    %v980 = vmax.f32 %v974, 0.0
    %v981 = vpack.c.bf16 %v977, %v977
    %v982 = vpack.c.bf16 %v978, %v978
    %v983 = vpack.c.bf16 %v979, %v979
    %v984 = vpack.c.bf16 %v980, %v980
    %v986 = vperm.slane %v872, 0
    %v987 = vperm.slane %v872, 1
    %v1054 = vunpack.c.l.b16 %v808
    %v1055 = vunpack.c.h.b16 %v808
    %v1056 = vunpack.c.l.b16 %v809
    %v1057 = vunpack.c.h.b16 %v809
    %v1058 = vunpack.c.l.b16 %v810
    %v1059 = vunpack.c.h.b16 %v810
    %v1060 = vunpack.c.l.b16 %v811
    %v1061 = vunpack.c.h.b16 %v811
    %v1062 = vunpack.c.l.b16 %v812
    %v1063 = vunpack.c.h.b16 %v812
    %v1064 = vunpack.c.l.b16 %v813
    %v1065 = vunpack.c.h.b16 %v813
    %v1066 = vunpack.c.l.b16 %v814
    %v1067 = vunpack.c.h.b16 %v814
    %v1068 = vunpack.c.l.b16 %v815
    %v1069 = vunpack.c.h.b16 %v815
    %v1070 = vunpack.c.l.b16 %v816
    %v1071 = vunpack.c.h.b16 %v816
    %v1072 = vunpack.c.l.b16 %v817
    %v1073 = vunpack.c.h.b16 %v817
    %v1074 = vunpack.c.l.b16 %v818
    %v1075 = vunpack.c.h.b16 %v818
    %v1076 = vunpack.c.l.b16 %v819
    %v1077 = vunpack.c.h.b16 %v819
    %v1078 = vunpack.c.l.b16 %v820
    %v1079 = vunpack.c.h.b16 %v820
    %v1080 = vunpack.c.l.b16 %v821
    %v1081 = vunpack.c.h.b16 %v821
    %v1082 = vunpack.c.l.b16 %v822
    %v1083 = vunpack.c.h.b16 %v822
    %v1084 = vunpack.c.l.b16 %v823
    %v1085 = vunpack.c.h.b16 %v823
    %v1086 = vunpack.c.l.b16 %v824
    %v1087 = vunpack.c.h.b16 %v824
    %v1088 = vunpack.c.l.b16 %v825
    %v1089 = vunpack.c.h.b16 %v825
    %v1090 = vunpack.c.l.b16 %v826
    %v1091 = vunpack.c.h.b16 %v826
    %v1092 = vunpack.c.l.b16 %v827
    %v1093 = vunpack.c.h.b16 %v827
    %v1094 = vunpack.c.l.b16 %v828
    %v1095 = vunpack.c.h.b16 %v828
    %v1096 = vunpack.c.l.b16 %v829
    %v1097 = vunpack.c.h.b16 %v829
    %v1098 = vunpack.c.l.b16 %v830
    %v1099 = vunpack.c.h.b16 %v830
    %v1100 = vunpack.c.l.b16 %v831
    %v1101 = vunpack.c.h.b16 %v831
    %v1102 = vunpack.c.l.b16 %v832
    %v1103 = vunpack.c.h.b16 %v832
    %v1104 = vunpack.c.l.b16 %v833
    %v1105 = vunpack.c.h.b16 %v833
    %v1106 = vunpack.c.l.b16 %v834
    %v1107 = vunpack.c.h.b16 %v834
    %v1108 = vunpack.c.l.b16 %v835
    %v1109 = vunpack.c.h.b16 %v835
    %v1110 = vunpack.c.l.b16 %v836
    %v1111 = vunpack.c.h.b16 %v836
    %v1112 = vunpack.c.l.b16 %v837
    %v1113 = vunpack.c.h.b16 %v837
    %v1114 = vunpack.c.l.b16 %v838
    %v1115 = vunpack.c.h.b16 %v838
    %v1116 = vunpack.c.l.b16 %v839
    %v1117 = vunpack.c.h.b16 %v839
    %v1118 = vunpack.c.l.b16 %v840
    %v1119 = vunpack.c.h.b16 %v840
    %v1120 = vunpack.c.l.b16 %v841
    %v1121 = vunpack.c.h.b16 %v841
    %v1122 = vunpack.c.l.b16 %v842
    %v1123 = vunpack.c.h.b16 %v842
    %v1124 = vunpack.c.l.b16 %v843
    %v1125 = vunpack.c.h.b16 %v843
    %v1126 = vunpack.c.l.b16 %v844
    %v1127 = vunpack.c.h.b16 %v844
    %v1128 = vunpack.c.l.b16 %v845
    %v1129 = vunpack.c.h.b16 %v845
    %v1130 = vunpack.c.l.b16 %v846
    %v1131 = vunpack.c.h.b16 %v846
    %v1132 = vunpack.c.l.b16 %v847
    %v1133 = vunpack.c.h.b16 %v847
    %v1134 = vunpack.c.l.b16 %v848
    %v1135 = vunpack.c.h.b16 %v848
    %v1136 = vunpack.c.l.b16 %v849
    %v1137 = vunpack.c.h.b16 %v849
    %v1138 = vunpack.c.l.b16 %v850
    %v1139 = vunpack.c.h.b16 %v850
    %v1140 = vunpack.c.l.b16 %v851
    %v1141 = vunpack.c.h.b16 %v851
    %v1142 = vunpack.c.l.b16 %v852
    %v1143 = vunpack.c.h.b16 %v852
    %v1144 = vunpack.c.l.b16 %v853
    %v1145 = vunpack.c.h.b16 %v853
    %v1146 = vunpack.c.l.b16 %v854
    %v1147 = vunpack.c.h.b16 %v854
    %v1148 = vunpack.c.l.b16 %v855
    %v1149 = vunpack.c.h.b16 %v855
    %v1150 = vunpack.c.l.b16 %v856
    %v1151 = vunpack.c.h.b16 %v856
    %v1152 = vunpack.c.l.b16 %v857
    %v1153 = vunpack.c.h.b16 %v857
    %v1154 = vunpack.c.l.b16 %v858
    %v1155 = vunpack.c.h.b16 %v858
    %v1156 = vunpack.c.l.b16 %v859
    %v1157 = vunpack.c.h.b16 %v859
    %v1158 = vunpack.c.l.b16 %v860
    %v1159 = vunpack.c.h.b16 %v860
    %v1160 = vunpack.c.l.b16 %v861
    %v1161 = vunpack.c.h.b16 %v861
    %v1162 = vunpack.c.l.b16 %v862
    %v1163 = vunpack.c.h.b16 %v862
    %v1164 = vunpack.c.l.b16 %v863
    %v1165 = vunpack.c.h.b16 %v863
    %v1166 = vunpack.c.l.b16 %v864
    %v1167 = vunpack.c.h.b16 %v864
    %v1168 = vunpack.c.l.b16 %v865
    %v1169 = vunpack.c.h.b16 %v865
    %v1170 = vunpack.c.l.b16 %v866
    %v1171 = vunpack.c.h.b16 %v866
    %v1172 = vunpack.c.l.b16 %v867
    %v1173 = vunpack.c.h.b16 %v867
    %v1174 = vunpack.c.l.b16 %v868
    %v1175 = vunpack.c.h.b16 %v868
    %v1176 = vunpack.c.l.b16 %v869
    %v1177 = vunpack.c.h.b16 %v869
    %v1178 = vunpack.c.l.b16 %v870
    %v1179 = vunpack.c.h.b16 %v870
    %v1180 = vunpack.c.l.b16 %v871
    %v1181 = vunpack.c.h.b16 %v871
    %v1182 = vpack.c.b16 %v1056, %v1054
    %v1183 = vpack.c.b16 %v1057, %v1055
    %v1184 = vpack.c.b16 %v1060, %v1058
    %v1185 = vpack.c.b16 %v1061, %v1059
    %v1186 = vpack.c.b16 %v1064, %v1062
    %v1187 = vpack.c.b16 %v1065, %v1063
    %v1188 = vpack.c.b16 %v1068, %v1066
    %v1189 = vpack.c.b16 %v1069, %v1067
    %v1190 = vpack.c.b16 %v1072, %v1070
    %v1191 = vpack.c.b16 %v1073, %v1071
    %v1192 = vpack.c.b16 %v1076, %v1074
    %v1193 = vpack.c.b16 %v1077, %v1075
    %v1194 = vpack.c.b16 %v1080, %v1078
    %v1195 = vpack.c.b16 %v1081, %v1079
    %v1196 = vpack.c.b16 %v1084, %v1082
    %v1197 = vpack.c.b16 %v1085, %v1083
    %v1198 = vpack.c.b16 %v1088, %v1086
    %v1199 = vpack.c.b16 %v1089, %v1087
    %v1200 = vpack.c.b16 %v1092, %v1090
    %v1201 = vpack.c.b16 %v1093, %v1091
    %v1202 = vpack.c.b16 %v1096, %v1094
    %v1203 = vpack.c.b16 %v1097, %v1095
    %v1204 = vpack.c.b16 %v1100, %v1098
    %v1205 = vpack.c.b16 %v1101, %v1099
    %v1206 = vpack.c.b16 %v1104, %v1102
    %v1207 = vpack.c.b16 %v1105, %v1103
    %v1208 = vpack.c.b16 %v1108, %v1106
    %v1209 = vpack.c.b16 %v1109, %v1107
    %v1210 = vpack.c.b16 %v1112, %v1110
    %v1211 = vpack.c.b16 %v1113, %v1111
    %v1212 = vpack.c.b16 %v1116, %v1114
    %v1213 = vpack.c.b16 %v1117, %v1115
    %v1214 = vpack.c.b16 %v1120, %v1118
    %v1215 = vpack.c.b16 %v1121, %v1119
    %v1216 = vpack.c.b16 %v1124, %v1122
    %v1217 = vpack.c.b16 %v1125, %v1123
    %v1218 = vpack.c.b16 %v1128, %v1126
    %v1219 = vpack.c.b16 %v1129, %v1127
    %v1220 = vpack.c.b16 %v1132, %v1130
    %v1221 = vpack.c.b16 %v1133, %v1131
    %v1222 = vpack.c.b16 %v1136, %v1134
    %v1223 = vpack.c.b16 %v1137, %v1135
    %v1224 = vpack.c.b16 %v1140, %v1138
    %v1225 = vpack.c.b16 %v1141, %v1139
    %v1226 = vpack.c.b16 %v1144, %v1142
    %v1227 = vpack.c.b16 %v1145, %v1143
    %v1228 = vpack.c.b16 %v1148, %v1146
    %v1229 = vpack.c.b16 %v1149, %v1147
    %v1230 = vpack.c.b16 %v1152, %v1150
    %v1231 = vpack.c.b16 %v1153, %v1151
    %v1232 = vpack.c.b16 %v1156, %v1154
    %v1233 = vpack.c.b16 %v1157, %v1155
    %v1234 = vpack.c.b16 %v1160, %v1158
    %v1235 = vpack.c.b16 %v1161, %v1159
    %v1236 = vpack.c.b16 %v1164, %v1162
    %v1237 = vpack.c.b16 %v1165, %v1163
    %v1238 = vpack.c.b16 %v1168, %v1166
    %v1239 = vpack.c.b16 %v1169, %v1167
    %v1240 = vpack.c.b16 %v1172, %v1170
    %v1241 = vpack.c.b16 %v1173, %v1171
    %v1242 = vpack.c.b16 %v1176, %v1174
    %v1243 = vpack.c.b16 %v1177, %v1175
    %v1244 = vpack.c.b16 %v1180, %v1178
    %v1245 = vpack.c.b16 %v1181, %v1179
    %1310 = vmatpush.bf16.msra.mxu0 %v1196
    %1311 = vmatpush.bf16.msra.mxu0 %v1194
    %1312 = vmatpush.bf16.msra.mxu0 %v1192
    %1313 = vmatpush.bf16.msra.mxu0 %v1190
    %1314 = vmatpush.bf16.msra.mxu0 %v1188
    %1315 = vmatpush.bf16.msra.mxu0 %v1186
    %1316 = vmatpush.bf16.msra.mxu0 %v1184
    %1317 = vmatpush.bf16.msra.mxu0 %v1182
    %1318 = vmatmul.bf16.gmra.mxu0 %v981
    %v1319 = vpop.f32.mrf.mxu0
    %v1320 = vadd.f32 %v986, %v1319
    %v1321 = vpop.f32.mrf.mxu0
    %1322 = vdwg.mxu0
    %1323 = vmatpush.bf16.msra.mxu0 %v1212
    %1324 = vmatpush.bf16.msra.mxu0 %v1210
    %1325 = vmatpush.bf16.msra.mxu0 %v1208
    %1326 = vmatpush.bf16.msra.mxu0 %v1206
    %1327 = vmatpush.bf16.msra.mxu0 %v1204
    %1328 = vmatpush.bf16.msra.mxu0 %v1202
    %1329 = vmatpush.bf16.msra.mxu0 %v1200
    %1330 = vmatpush.bf16.msra.mxu0 %v1198
    %1331 = vmatmul.bf16.gmra.mxu0 %v982
    %v1332 = vpop.f32.mrf.mxu0
    %v1333 = vadd.f32 %v1320, %v1332
    %v1334 = vpop.f32.mrf.mxu0
    %1335 = vdwg.mxu0
    %1336 = vmatpush.bf16.msra.mxu0 %v1228
    %1337 = vmatpush.bf16.msra.mxu0 %v1226
    %1338 = vmatpush.bf16.msra.mxu0 %v1224
    %1339 = vmatpush.bf16.msra.mxu0 %v1222
    %1340 = vmatpush.bf16.msra.mxu0 %v1220
    %1341 = vmatpush.bf16.msra.mxu0 %v1218
    %1342 = vmatpush.bf16.msra.mxu0 %v1216
    %1343 = vmatpush.bf16.msra.mxu0 %v1214
    %1344 = vmatmul.bf16.gmra.mxu0 %v983
    %v1345 = vpop.f32.mrf.mxu0
    %v1346 = vadd.f32 %v1333, %v1345
    %v1347 = vpop.f32.mrf.mxu0
    %1348 = vdwg.mxu0
    %1349 = vmatpush.bf16.msra.mxu0 %v1244
    %1350 = vmatpush.bf16.msra.mxu0 %v1242
    %1351 = vmatpush.bf16.msra.mxu0 %v1240
    %1352 = vmatpush.bf16.msra.mxu0 %v1238
    %1353 = vmatpush.bf16.msra.mxu0 %v1236
    %1354 = vmatpush.bf16.msra.mxu0 %v1234
    %1355 = vmatpush.bf16.msra.mxu0 %v1232
    %1356 = vmatpush.bf16.msra.mxu0 %v1230
    %1357 = vmatmul.bf16.gmra.mxu0 %v984
    %v1358 = vpop.f32.mrf.mxu0
    %v1359 = vadd.f32 %v1346, %v1358
    %v1360 = vpop.f32.mrf.mxu0
    %1361 = vdwg.mxu0
    %1362 = vmatpush.bf16.msra.mxu0 %v1197
    %1363 = vmatpush.bf16.msra.mxu0 %v1195
    %1364 = vmatpush.bf16.msra.mxu0 %v1193
    %1365 = vmatpush.bf16.msra.mxu0 %v1191
    %1366 = vmatpush.bf16.msra.mxu0 %v1189
    %1367 = vmatpush.bf16.msra.mxu0 %v1187
    %1368 = vmatpush.bf16.msra.mxu0 %v1185
    %1369 = vmatpush.bf16.msra.mxu0 %v1183
    %1370 = vmatmul.bf16.gmra.mxu0 %v981
    %v1371 = vpop.f32.mrf.mxu0
    %v1372 = vadd.f32 %v987, %v1371
    %v1373 = vpop.f32.mrf.mxu0
    %1374 = vdwg.mxu0
    %1375 = vmatpush.bf16.msra.mxu0 %v1213
    %1376 = vmatpush.bf16.msra.mxu0 %v1211
    %1377 = vmatpush.bf16.msra.mxu0 %v1209
    %1378 = vmatpush.bf16.msra.mxu0 %v1207
    %1379 = vmatpush.bf16.msra.mxu0 %v1205
    %1380 = vmatpush.bf16.msra.mxu0 %v1203
    %1381 = vmatpush.bf16.msra.mxu0 %v1201
    %1382 = vmatpush.bf16.msra.mxu0 %v1199
    %1383 = vmatmul.bf16.gmra.mxu0 %v982
    %v1384 = vpop.f32.mrf.mxu0
    %v1385 = vadd.f32 %v1372, %v1384
    %v1386 = vpop.f32.mrf.mxu0
    %1387 = vdwg.mxu0
    %1388 = vmatpush.bf16.msra.mxu0 %v1229
    %1389 = vmatpush.bf16.msra.mxu0 %v1227
    %1390 = vmatpush.bf16.msra.mxu0 %v1225
    %1391 = vmatpush.bf16.msra.mxu0 %v1223
    %1392 = vmatpush.bf16.msra.mxu0 %v1221
    %1393 = vmatpush.bf16.msra.mxu0 %v1219
    %1394 = vmatpush.bf16.msra.mxu0 %v1217
    %1395 = vmatpush.bf16.msra.mxu0 %v1215
    %1396 = vmatmul.bf16.gmra.mxu0 %v983
    %v1397 = vpop.f32.mrf.mxu0
    %v1398 = vadd.f32 %v1385, %v1397
    %v1399 = vpop.f32.mrf.mxu0
    %1400 = vdwg.mxu0
    %1401 = vmatpush.bf16.msra.mxu0 %v1245
    %1402 = vmatpush.bf16.msra.mxu0 %v1243
    %1403 = vmatpush.bf16.msra.mxu0 %v1241
    %1404 = vmatpush.bf16.msra.mxu0 %v1239
    %1405 = vmatpush.bf16.msra.mxu0 %v1237
    %1406 = vmatpush.bf16.msra.mxu0 %v1235
    %1407 = vmatpush.bf16.msra.mxu0 %v1233
    %1408 = vmatpush.bf16.msra.mxu0 %v1231
    %1409 = vmatmul.bf16.gmra.mxu0 %v984
    %v1410 = vpop.f32.mrf.mxu0
    %v1411 = vadd.f32 %v1398, %v1410
    %v1412 = vpop.f32.mrf.mxu0
    %1413 = vdwg.mxu0
    %v1414 = vmax.f32 %v1359, 0.0
    %v1415 = vmax.f32 %v1411, 0.0
    %v1416 = vpack.c.bf16 %v1414, %v1414
    %v1417 = vpack.c.bf16 %v1415, %v1415
    %v1418 = vadd.s32 %v799, 5
    %1419 = vset.pattern.permute.xlu0 1
    %1420 = vperm.xlu0 %1419, %v1418
    %v1421 = vpop.permute.xlu0 %1420
    %vm1422 = vcmp.eq.s32.totalorder %v874, %v1421
    %v1423 = vsel %vm1422, 1, 0
    %v1424 = vcvt.s32.f32 %v1423
    %v1425 = vpack.c.bf16 %v1424, %v1424
    %v1427 = vsel %vm284, %v1425, 0
    %1429 = vmatpush.bf16.msra.mxu0 0
    %1430 = vmatpush.bf16.msra.mxu0 0
    %1431 = vmatpush.bf16.msra.mxu0 0
    %1432 = vmatpush.bf16.msra.mxu0 0
    %1433 = vmatpush.bf16.msra.mxu0 0
    %1434 = vmatpush.bf16.msra.mxu0 0
    %1435 = vmatpush.bf16.msra.mxu0 %v910
    %1436 = vmatpush.bf16.msra.mxu0 %v906
    %1437 = vmatmul.bf16.gmra.mxu0 %v1427
    %v1438 = vpop.f32.mrf.mxu0
    %v1439 = vadd.f32 0.0, %v1438
    %v1440 = vpop.f32.mrf.mxu0
    %1441 = vdwg.mxu0
    %1442 = vmatpush.bf16.msra.mxu0 0
    %1443 = vmatpush.bf16.msra.mxu0 0
    %1444 = vmatpush.bf16.msra.mxu0 0
    %1445 = vmatpush.bf16.msra.mxu0 0
    %1446 = vmatpush.bf16.msra.mxu0 0
    %1447 = vmatpush.bf16.msra.mxu0 0
    %1448 = vmatpush.bf16.msra.mxu0 %v911
    %1449 = vmatpush.bf16.msra.mxu0 %v907
    %1450 = vmatmul.bf16.gmra.mxu0 %v1427
    %v1451 = vpop.f32.mrf.mxu0
    %v1452 = vadd.f32 0.0, %v1451
    %v1453 = vpop.f32.mrf.mxu0
    %1454 = vdwg.mxu0
    %1455 = vmatpush.bf16.msra.mxu0 0
    %1456 = vmatpush.bf16.msra.mxu0 0
    %1457 = vmatpush.bf16.msra.mxu0 0
    %1458 = vmatpush.bf16.msra.mxu0 0
    %1459 = vmatpush.bf16.msra.mxu0 0
    %1460 = vmatpush.bf16.msra.mxu0 0
    %1461 = vmatpush.bf16.msra.mxu0 %v912
    %1462 = vmatpush.bf16.msra.mxu0 %v908
    %1463 = vmatmul.bf16.gmra.mxu0 %v1427
    %v1464 = vpop.f32.mrf.mxu0
    %v1465 = vadd.f32 0.0, %v1464
    %v1466 = vpop.f32.mrf.mxu0
    %1467 = vdwg.mxu0
    %1468 = vmatpush.bf16.msra.mxu0 0
    %1469 = vmatpush.bf16.msra.mxu0 0
    %1470 = vmatpush.bf16.msra.mxu0 0
    %1471 = vmatpush.bf16.msra.mxu0 0
    %1472 = vmatpush.bf16.msra.mxu0 0
    %1473 = vmatpush.bf16.msra.mxu0 0
    %1474 = vmatpush.bf16.msra.mxu0 %v913
    %1475 = vmatpush.bf16.msra.mxu0 %v909
    %1476 = vmatmul.bf16.gmra.mxu0 %v1427
    %v1477 = vpop.f32.mrf.mxu0
    %v1478 = vadd.f32 0.0, %v1477
    %v1479 = vpop.f32.mrf.mxu0
    %1480 = vdwg.mxu0
    %v1481 = vmax.f32 %v1439, 0.0
    %v1482 = vmax.f32 %v1452, 0.0
    %v1483 = vmax.f32 %v1465, 0.0
    %v1484 = vmax.f32 %v1478, 0.0
    %v1485 = vpack.c.bf16 %v1481, %v1481
    %v1486 = vpack.c.bf16 %v1482, %v1482
    %v1487 = vpack.c.bf16 %v1483, %v1483
    %v1488 = vpack.c.bf16 %v1484, %v1484
    %1489 = vmatpush.bf16.msra.mxu0 %v1196
    %1490 = vmatpush.bf16.msra.mxu0 %v1194
    %1491 = vmatpush.bf16.msra.mxu0 %v1192
    %1492 = vmatpush.bf16.msra.mxu0 %v1190
    %1493 = vmatpush.bf16.msra.mxu0 %v1188
    %1494 = vmatpush.bf16.msra.mxu0 %v1186
    %1495 = vmatpush.bf16.msra.mxu0 %v1184
    %1496 = vmatpush.bf16.msra.mxu0 %v1182
    %1497 = vmatmul.bf16.gmra.mxu0 %v1485
    %v1498 = vpop.f32.mrf.mxu0
    %v1499 = vadd.f32 %v986, %v1498
    %v1500 = vpop.f32.mrf.mxu0
    %1501 = vdwg.mxu0
    %1502 = vmatpush.bf16.msra.mxu0 %v1212
    %1503 = vmatpush.bf16.msra.mxu0 %v1210
    %1504 = vmatpush.bf16.msra.mxu0 %v1208
    %1505 = vmatpush.bf16.msra.mxu0 %v1206
    %1506 = vmatpush.bf16.msra.mxu0 %v1204
    %1507 = vmatpush.bf16.msra.mxu0 %v1202
    %1508 = vmatpush.bf16.msra.mxu0 %v1200
    %1509 = vmatpush.bf16.msra.mxu0 %v1198
    %1510 = vmatmul.bf16.gmra.mxu0 %v1486
    %v1511 = vpop.f32.mrf.mxu0
    %v1512 = vadd.f32 %v1499, %v1511
    %v1513 = vpop.f32.mrf.mxu0
    %1514 = vdwg.mxu0
    %1515 = vmatpush.bf16.msra.mxu0 %v1228
    %1516 = vmatpush.bf16.msra.mxu0 %v1226
    %1517 = vmatpush.bf16.msra.mxu0 %v1224
    %1518 = vmatpush.bf16.msra.mxu0 %v1222
    %1519 = vmatpush.bf16.msra.mxu0 %v1220
    %1520 = vmatpush.bf16.msra.mxu0 %v1218
    %1521 = vmatpush.bf16.msra.mxu0 %v1216
    %1522 = vmatpush.bf16.msra.mxu0 %v1214
    %1523 = vmatmul.bf16.gmra.mxu0 %v1487
    %v1524 = vpop.f32.mrf.mxu0
    %v1525 = vadd.f32 %v1512, %v1524
    %v1526 = vpop.f32.mrf.mxu0
    %1527 = vdwg.mxu0
    %1528 = vmatpush.bf16.msra.mxu0 %v1244
    %1529 = vmatpush.bf16.msra.mxu0 %v1242
    %1530 = vmatpush.bf16.msra.mxu0 %v1240
    %1531 = vmatpush.bf16.msra.mxu0 %v1238
    %1532 = vmatpush.bf16.msra.mxu0 %v1236
    %1533 = vmatpush.bf16.msra.mxu0 %v1234
    %1534 = vmatpush.bf16.msra.mxu0 %v1232
    %1535 = vmatpush.bf16.msra.mxu0 %v1230
    %1536 = vmatmul.bf16.gmra.mxu0 %v1488
    %v1537 = vpop.f32.mrf.mxu0
    %v1538 = vadd.f32 %v1525, %v1537
    %v1539 = vpop.f32.mrf.mxu0
    %1540 = vdwg.mxu0
    %1541 = vmatpush.bf16.msra.mxu0 %v1197
    %1542 = vmatpush.bf16.msra.mxu0 %v1195
    %1543 = vmatpush.bf16.msra.mxu0 %v1193
    %1544 = vmatpush.bf16.msra.mxu0 %v1191
    %1545 = vmatpush.bf16.msra.mxu0 %v1189
    %1546 = vmatpush.bf16.msra.mxu0 %v1187
    %1547 = vmatpush.bf16.msra.mxu0 %v1185
    %1548 = vmatpush.bf16.msra.mxu0 %v1183
    %1549 = vmatmul.bf16.gmra.mxu0 %v1485
    %v1550 = vpop.f32.mrf.mxu0
    %v1551 = vadd.f32 %v987, %v1550
    %v1552 = vpop.f32.mrf.mxu0
    %1553 = vdwg.mxu0
    %1554 = vmatpush.bf16.msra.mxu0 %v1213
    %1555 = vmatpush.bf16.msra.mxu0 %v1211
    %1556 = vmatpush.bf16.msra.mxu0 %v1209
    %1557 = vmatpush.bf16.msra.mxu0 %v1207
    %1558 = vmatpush.bf16.msra.mxu0 %v1205
    %1559 = vmatpush.bf16.msra.mxu0 %v1203
    %1560 = vmatpush.bf16.msra.mxu0 %v1201
    %1561 = vmatpush.bf16.msra.mxu0 %v1199
    %1562 = vmatmul.bf16.gmra.mxu0 %v1486
    %v1563 = vpop.f32.mrf.mxu0
    %v1564 = vadd.f32 %v1551, %v1563
    %v1565 = vpop.f32.mrf.mxu0
    %1566 = vdwg.mxu0
    %1567 = vmatpush.bf16.msra.mxu0 %v1229
    %1568 = vmatpush.bf16.msra.mxu0 %v1227
    %1569 = vmatpush.bf16.msra.mxu0 %v1225
    %1570 = vmatpush.bf16.msra.mxu0 %v1223
    %1571 = vmatpush.bf16.msra.mxu0 %v1221
    %1572 = vmatpush.bf16.msra.mxu0 %v1219
    %1573 = vmatpush.bf16.msra.mxu0 %v1217
    %1574 = vmatpush.bf16.msra.mxu0 %v1215
    %1575 = vmatmul.bf16.gmra.mxu0 %v1487
    %v1576 = vpop.f32.mrf.mxu0
    %v1577 = vadd.f32 %v1564, %v1576
    %v1578 = vpop.f32.mrf.mxu0
    %1579 = vdwg.mxu0
    %1580 = vmatpush.bf16.msra.mxu0 %v1245
    %1581 = vmatpush.bf16.msra.mxu0 %v1243
    %1582 = vmatpush.bf16.msra.mxu0 %v1241
    %1583 = vmatpush.bf16.msra.mxu0 %v1239
    %1584 = vmatpush.bf16.msra.mxu0 %v1237
    %1585 = vmatpush.bf16.msra.mxu0 %v1235
    %1586 = vmatpush.bf16.msra.mxu0 %v1233
    %1587 = vmatpush.bf16.msra.mxu0 %v1231
    %1588 = vmatmul.bf16.gmra.mxu0 %v1488
    %v1589 = vpop.f32.mrf.mxu0
    %v1590 = vadd.f32 %v1577, %v1589
    %v1591 = vpop.f32.mrf.mxu0
    %1592 = vdwg.mxu0
    %v1593 = vmax.f32 %v1538, 0.0
    %v1594 = vmax.f32 %v1590, 0.0
    %v1595 = vpack.c.bf16 %v1593, %v1593
    %v1596 = vpack.c.bf16 %v1594, %v1594
    %v1597 = vadd.s32 %v799, 10
    %1598 = vset.pattern.permute.xlu0 2
    %1599 = vperm.xlu0 %1598, %v1597
    %v1600 = vpop.permute.xlu0 %1599
    %vm1601 = vcmp.eq.s32.totalorder %v874, %v1600
    %v1602 = vsel %vm1601, 1, 0
    %v1603 = vcvt.s32.f32 %v1602
    %v1604 = vpack.c.bf16 %v1603, %v1603
    %v1606 = vsel %vm284, %v1604, 0
    %1608 = vmatpush.bf16.msra.mxu0 0
    %1609 = vmatpush.bf16.msra.mxu0 0
    %1610 = vmatpush.bf16.msra.mxu0 0
    %1611 = vmatpush.bf16.msra.mxu0 0
    %1612 = vmatpush.bf16.msra.mxu0 0
    %1613 = vmatpush.bf16.msra.mxu0 0
    %1614 = vmatpush.bf16.msra.mxu0 %v910
    %1615 = vmatpush.bf16.msra.mxu0 %v906
    %1616 = vmatmul.bf16.gmra.mxu0 %v1606
    %v1617 = vpop.f32.mrf.mxu0
    %v1618 = vadd.f32 0.0, %v1617
    %v1619 = vpop.f32.mrf.mxu0
    %1620 = vdwg.mxu0
    %1621 = vmatpush.bf16.msra.mxu0 0
    %1622 = vmatpush.bf16.msra.mxu0 0
    %1623 = vmatpush.bf16.msra.mxu0 0
    %1624 = vmatpush.bf16.msra.mxu0 0
    %1625 = vmatpush.bf16.msra.mxu0 0
    %1626 = vmatpush.bf16.msra.mxu0 0
    %1627 = vmatpush.bf16.msra.mxu0 %v911
    %1628 = vmatpush.bf16.msra.mxu0 %v907
    %1629 = vmatmul.bf16.gmra.mxu0 %v1606
    %v1630 = vpop.f32.mrf.mxu0
    %v1631 = vadd.f32 0.0, %v1630
    %v1632 = vpop.f32.mrf.mxu0
    %1633 = vdwg.mxu0
    %1634 = vmatpush.bf16.msra.mxu0 0
    %1635 = vmatpush.bf16.msra.mxu0 0
    %1636 = vmatpush.bf16.msra.mxu0 0
    %1637 = vmatpush.bf16.msra.mxu0 0
    %1638 = vmatpush.bf16.msra.mxu0 0
    %1639 = vmatpush.bf16.msra.mxu0 0
    %1640 = vmatpush.bf16.msra.mxu0 %v912
    %1641 = vmatpush.bf16.msra.mxu0 %v908
    %1642 = vmatmul.bf16.gmra.mxu0 %v1606
    %v1643 = vpop.f32.mrf.mxu0
    %v1644 = vadd.f32 0.0, %v1643
    %v1645 = vpop.f32.mrf.mxu0
    %1646 = vdwg.mxu0
    %1647 = vmatpush.bf16.msra.mxu0 0
    %1648 = vmatpush.bf16.msra.mxu0 0
    %1649 = vmatpush.bf16.msra.mxu0 0
    %1650 = vmatpush.bf16.msra.mxu0 0
    %1651 = vmatpush.bf16.msra.mxu0 0
    %1652 = vmatpush.bf16.msra.mxu0 0
    %1653 = vmatpush.bf16.msra.mxu0 %v913
    %1654 = vmatpush.bf16.msra.mxu0 %v909
    %1655 = vmatmul.bf16.gmra.mxu0 %v1606
    %v1656 = vpop.f32.mrf.mxu0
    %v1657 = vadd.f32 0.0, %v1656
    %v1658 = vpop.f32.mrf.mxu0
    %1659 = vdwg.mxu0
    %v1660 = vmax.f32 %v1618, 0.0
    %v1661 = vmax.f32 %v1631, 0.0
    %v1662 = vmax.f32 %v1644, 0.0
    %v1663 = vmax.f32 %v1657, 0.0
    %v1664 = vpack.c.bf16 %v1660, %v1660
    %v1665 = vpack.c.bf16 %v1661, %v1661
    %v1666 = vpack.c.bf16 %v1662, %v1662
    %v1667 = vpack.c.bf16 %v1663, %v1663
    %1668 = vmatpush.bf16.msra.mxu0 %v1196
    %1669 = vmatpush.bf16.msra.mxu0 %v1194
    %1670 = vmatpush.bf16.msra.mxu0 %v1192
    %1671 = vmatpush.bf16.msra.mxu0 %v1190
    %1672 = vmatpush.bf16.msra.mxu0 %v1188
    %1673 = vmatpush.bf16.msra.mxu0 %v1186
    %1674 = vmatpush.bf16.msra.mxu0 %v1184
    %1675 = vmatpush.bf16.msra.mxu0 %v1182
    %1676 = vmatmul.bf16.gmra.mxu0 %v1664
    %v1677 = vpop.f32.mrf.mxu0
    %v1678 = vadd.f32 %v986, %v1677
    %v1679 = vpop.f32.mrf.mxu0
    %1680 = vdwg.mxu0
    %1681 = vmatpush.bf16.msra.mxu0 %v1212
    %1682 = vmatpush.bf16.msra.mxu0 %v1210
    %1683 = vmatpush.bf16.msra.mxu0 %v1208
    %1684 = vmatpush.bf16.msra.mxu0 %v1206
    %1685 = vmatpush.bf16.msra.mxu0 %v1204
    %1686 = vmatpush.bf16.msra.mxu0 %v1202
    %1687 = vmatpush.bf16.msra.mxu0 %v1200
    %1688 = vmatpush.bf16.msra.mxu0 %v1198
    %1689 = vmatmul.bf16.gmra.mxu0 %v1665
    %v1690 = vpop.f32.mrf.mxu0
    %v1691 = vadd.f32 %v1678, %v1690
    %v1692 = vpop.f32.mrf.mxu0
    %1693 = vdwg.mxu0
    %1694 = vmatpush.bf16.msra.mxu0 %v1228
    %1695 = vmatpush.bf16.msra.mxu0 %v1226
    %1696 = vmatpush.bf16.msra.mxu0 %v1224
    %1697 = vmatpush.bf16.msra.mxu0 %v1222
    %1698 = vmatpush.bf16.msra.mxu0 %v1220
    %1699 = vmatpush.bf16.msra.mxu0 %v1218
    %1700 = vmatpush.bf16.msra.mxu0 %v1216
    %1701 = vmatpush.bf16.msra.mxu0 %v1214
    %1702 = vmatmul.bf16.gmra.mxu0 %v1666
    %v1703 = vpop.f32.mrf.mxu0
    %v1704 = vadd.f32 %v1691, %v1703
    %v1705 = vpop.f32.mrf.mxu0
    %1706 = vdwg.mxu0
    %1707 = vmatpush.bf16.msra.mxu0 %v1244
    %1708 = vmatpush.bf16.msra.mxu0 %v1242
    %1709 = vmatpush.bf16.msra.mxu0 %v1240
    %1710 = vmatpush.bf16.msra.mxu0 %v1238
    %1711 = vmatpush.bf16.msra.mxu0 %v1236
    %1712 = vmatpush.bf16.msra.mxu0 %v1234
    %1713 = vmatpush.bf16.msra.mxu0 %v1232
    %1714 = vmatpush.bf16.msra.mxu0 %v1230
    %1715 = vmatmul.bf16.gmra.mxu0 %v1667
    %v1716 = vpop.f32.mrf.mxu0
    %v1717 = vadd.f32 %v1704, %v1716
    %v1718 = vpop.f32.mrf.mxu0
    %1719 = vdwg.mxu0
    %1720 = vmatpush.bf16.msra.mxu0 %v1197
    %1721 = vmatpush.bf16.msra.mxu0 %v1195
    %1722 = vmatpush.bf16.msra.mxu0 %v1193
    %1723 = vmatpush.bf16.msra.mxu0 %v1191
    %1724 = vmatpush.bf16.msra.mxu0 %v1189
    %1725 = vmatpush.bf16.msra.mxu0 %v1187
    %1726 = vmatpush.bf16.msra.mxu0 %v1185
    %1727 = vmatpush.bf16.msra.mxu0 %v1183
    %1728 = vmatmul.bf16.gmra.mxu0 %v1664
    %v1729 = vpop.f32.mrf.mxu0
    %v1730 = vadd.f32 %v987, %v1729
    %v1731 = vpop.f32.mrf.mxu0
    %1732 = vdwg.mxu0
    %1733 = vmatpush.bf16.msra.mxu0 %v1213
    %1734 = vmatpush.bf16.msra.mxu0 %v1211
    %1735 = vmatpush.bf16.msra.mxu0 %v1209
    %1736 = vmatpush.bf16.msra.mxu0 %v1207
    %1737 = vmatpush.bf16.msra.mxu0 %v1205
    %1738 = vmatpush.bf16.msra.mxu0 %v1203
    %1739 = vmatpush.bf16.msra.mxu0 %v1201
    %1740 = vmatpush.bf16.msra.mxu0 %v1199
    %1741 = vmatmul.bf16.gmra.mxu0 %v1665
    %v1742 = vpop.f32.mrf.mxu0
    %v1743 = vadd.f32 %v1730, %v1742
    %v1744 = vpop.f32.mrf.mxu0
    %1745 = vdwg.mxu0
    %1746 = vmatpush.bf16.msra.mxu0 %v1229
    %1747 = vmatpush.bf16.msra.mxu0 %v1227
    %1748 = vmatpush.bf16.msra.mxu0 %v1225
    %1749 = vmatpush.bf16.msra.mxu0 %v1223
    %1750 = vmatpush.bf16.msra.mxu0 %v1221
    %1751 = vmatpush.bf16.msra.mxu0 %v1219
    %1752 = vmatpush.bf16.msra.mxu0 %v1217
    %1753 = vmatpush.bf16.msra.mxu0 %v1215
    %1754 = vmatmul.bf16.gmra.mxu0 %v1666
    %v1755 = vpop.f32.mrf.mxu0
    %v1756 = vadd.f32 %v1743, %v1755
    %v1757 = vpop.f32.mrf.mxu0
    %1758 = vdwg.mxu0
    %1759 = vmatpush.bf16.msra.mxu0 %v1245
    %1760 = vmatpush.bf16.msra.mxu0 %v1243
    %1761 = vmatpush.bf16.msra.mxu0 %v1241
    %1762 = vmatpush.bf16.msra.mxu0 %v1239
    %1763 = vmatpush.bf16.msra.mxu0 %v1237
    %1764 = vmatpush.bf16.msra.mxu0 %v1235
    %1765 = vmatpush.bf16.msra.mxu0 %v1233
    %1766 = vmatpush.bf16.msra.mxu0 %v1231
    %1767 = vmatmul.bf16.gmra.mxu0 %v1667
    %v1768 = vpop.f32.mrf.mxu0
    %v1769 = vadd.f32 %v1756, %v1768
    %v1770 = vpop.f32.mrf.mxu0
    %1771 = vdwg.mxu0
    %v1772 = vmax.f32 %v1717, 0.0
    %v1773 = vmax.f32 %v1769, 0.0
    %v1774 = vpack.c.bf16 %v1772, %v1772
    %v1775 = vpack.c.bf16 %v1773, %v1773
    %v1776 = vadd.s32 %v799, 15
    %1777 = vset.pattern.permute.xlu0 3
    %1778 = vperm.xlu0 %1777, %v1776
    %v1779 = vpop.permute.xlu0 %1778
    %vm1780 = vcmp.eq.s32.totalorder %v874, %v1779
    %v1781 = vsel %vm1780, 1, 0
    %v1782 = vcvt.s32.f32 %v1781
    %v1783 = vpack.c.bf16 %v1782, %v1782
    %v1785 = vsel %vm284, %v1783, 0
    %1787 = vmatpush.bf16.msra.mxu0 0
    %1788 = vmatpush.bf16.msra.mxu0 0
    %1789 = vmatpush.bf16.msra.mxu0 0
    %1790 = vmatpush.bf16.msra.mxu0 0
    %1791 = vmatpush.bf16.msra.mxu0 0
    %1792 = vmatpush.bf16.msra.mxu0 0
    %1793 = vmatpush.bf16.msra.mxu0 %v910
    %1794 = vmatpush.bf16.msra.mxu0 %v906
    %1795 = vmatmul.bf16.gmra.mxu0 %v1785
    %v1796 = vpop.f32.mrf.mxu0
    %v1797 = vadd.f32 0.0, %v1796
    %v1798 = vpop.f32.mrf.mxu0
    %1799 = vdwg.mxu0
    %1800 = vmatpush.bf16.msra.mxu0 0
    %1801 = vmatpush.bf16.msra.mxu0 0
    %1802 = vmatpush.bf16.msra.mxu0 0
    %1803 = vmatpush.bf16.msra.mxu0 0
    %1804 = vmatpush.bf16.msra.mxu0 0
    %1805 = vmatpush.bf16.msra.mxu0 0
    %1806 = vmatpush.bf16.msra.mxu0 %v911
    %1807 = vmatpush.bf16.msra.mxu0 %v907
    %1808 = vmatmul.bf16.gmra.mxu0 %v1785
    %v1809 = vpop.f32.mrf.mxu0
    %v1810 = vadd.f32 0.0, %v1809
    %v1811 = vpop.f32.mrf.mxu0
    %1812 = vdwg.mxu0
    %1813 = vmatpush.bf16.msra.mxu0 0
    %1814 = vmatpush.bf16.msra.mxu0 0
    %1815 = vmatpush.bf16.msra.mxu0 0
    %1816 = vmatpush.bf16.msra.mxu0 0
    %1817 = vmatpush.bf16.msra.mxu0 0
    %1818 = vmatpush.bf16.msra.mxu0 0
    %1819 = vmatpush.bf16.msra.mxu0 %v912
    %1820 = vmatpush.bf16.msra.mxu0 %v908
    %1821 = vmatmul.bf16.gmra.mxu0 %v1785
    %v1822 = vpop.f32.mrf.mxu0
    %v1823 = vadd.f32 0.0, %v1822
    %v1824 = vpop.f32.mrf.mxu0
    %1825 = vdwg.mxu0
    %1826 = vmatpush.bf16.msra.mxu0 0
    %1827 = vmatpush.bf16.msra.mxu0 0
    %1828 = vmatpush.bf16.msra.mxu0 0
    %1829 = vmatpush.bf16.msra.mxu0 0
    %1830 = vmatpush.bf16.msra.mxu0 0
    %1831 = vmatpush.bf16.msra.mxu0 0
    %1832 = vmatpush.bf16.msra.mxu0 %v913
    %1833 = vmatpush.bf16.msra.mxu0 %v909
    %1834 = vmatmul.bf16.gmra.mxu0 %v1785
    %v1835 = vpop.f32.mrf.mxu0
    %v1836 = vadd.f32 0.0, %v1835
    %v1837 = vpop.f32.mrf.mxu0
    %1838 = vdwg.mxu0
    %v1839 = vmax.f32 %v1797, 0.0
    %v1840 = vmax.f32 %v1810, 0.0
    %v1841 = vmax.f32 %v1823, 0.0
    %v1842 = vmax.f32 %v1836, 0.0
    %v1843 = vpack.c.bf16 %v1839, %v1839
    %v1844 = vpack.c.bf16 %v1840, %v1840
    %v1845 = vpack.c.bf16 %v1841, %v1841
    %v1846 = vpack.c.bf16 %v1842, %v1842
    %1847 = vmatpush.bf16.msra.mxu0 %v1196
    %1848 = vmatpush.bf16.msra.mxu0 %v1194
    %1849 = vmatpush.bf16.msra.mxu0 %v1192
    %1850 = vmatpush.bf16.msra.mxu0 %v1190
    %1851 = vmatpush.bf16.msra.mxu0 %v1188
    %1852 = vmatpush.bf16.msra.mxu0 %v1186
    %1853 = vmatpush.bf16.msra.mxu0 %v1184
    %1854 = vmatpush.bf16.msra.mxu0 %v1182
    %1855 = vmatmul.bf16.gmra.mxu0 %v1843
    %v1856 = vpop.f32.mrf.mxu0
    %v1857 = vadd.f32 %v986, %v1856
    %v1858 = vpop.f32.mrf.mxu0
    %1859 = vdwg.mxu0
    %1860 = vmatpush.bf16.msra.mxu0 %v1212
    %1861 = vmatpush.bf16.msra.mxu0 %v1210
    %1862 = vmatpush.bf16.msra.mxu0 %v1208
    %1863 = vmatpush.bf16.msra.mxu0 %v1206
    %1864 = vmatpush.bf16.msra.mxu0 %v1204
    %1865 = vmatpush.bf16.msra.mxu0 %v1202
    %1866 = vmatpush.bf16.msra.mxu0 %v1200
    %1867 = vmatpush.bf16.msra.mxu0 %v1198
    %1868 = vmatmul.bf16.gmra.mxu0 %v1844
    %v1869 = vpop.f32.mrf.mxu0
    %v1870 = vadd.f32 %v1857, %v1869
    %v1871 = vpop.f32.mrf.mxu0
    %1872 = vdwg.mxu0
    %1873 = vmatpush.bf16.msra.mxu0 %v1228
    %1874 = vmatpush.bf16.msra.mxu0 %v1226
    %1875 = vmatpush.bf16.msra.mxu0 %v1224
    %1876 = vmatpush.bf16.msra.mxu0 %v1222
    %1877 = vmatpush.bf16.msra.mxu0 %v1220
    %1878 = vmatpush.bf16.msra.mxu0 %v1218
    %1879 = vmatpush.bf16.msra.mxu0 %v1216
    %1880 = vmatpush.bf16.msra.mxu0 %v1214
    %1881 = vmatmul.bf16.gmra.mxu0 %v1845
    %v1882 = vpop.f32.mrf.mxu0
    %v1883 = vadd.f32 %v1870, %v1882
    %v1884 = vpop.f32.mrf.mxu0
    %1885 = vdwg.mxu0
    %1886 = vmatpush.bf16.msra.mxu0 %v1244
    %1887 = vmatpush.bf16.msra.mxu0 %v1242
    %1888 = vmatpush.bf16.msra.mxu0 %v1240
    %1889 = vmatpush.bf16.msra.mxu0 %v1238
    %1890 = vmatpush.bf16.msra.mxu0 %v1236
    %1891 = vmatpush.bf16.msra.mxu0 %v1234
    %1892 = vmatpush.bf16.msra.mxu0 %v1232
    %1893 = vmatpush.bf16.msra.mxu0 %v1230
    %1894 = vmatmul.bf16.gmra.mxu0 %v1846
    %v1895 = vpop.f32.mrf.mxu0
    %v1896 = vadd.f32 %v1883, %v1895
    %v1897 = vpop.f32.mrf.mxu0
    %1898 = vdwg.mxu0
    %1899 = vmatpush.bf16.msra.mxu0 %v1197
    %1900 = vmatpush.bf16.msra.mxu0 %v1195
    %1901 = vmatpush.bf16.msra.mxu0 %v1193
    %1902 = vmatpush.bf16.msra.mxu0 %v1191
    %1903 = vmatpush.bf16.msra.mxu0 %v1189
    %1904 = vmatpush.bf16.msra.mxu0 %v1187
    %1905 = vmatpush.bf16.msra.mxu0 %v1185
    %1906 = vmatpush.bf16.msra.mxu0 %v1183
    %1907 = vmatmul.bf16.gmra.mxu0 %v1843
    %v1908 = vpop.f32.mrf.mxu0
    %v1909 = vadd.f32 %v987, %v1908
    %v1910 = vpop.f32.mrf.mxu0
    %1911 = vdwg.mxu0
    %1912 = vmatpush.bf16.msra.mxu0 %v1213
    %1913 = vmatpush.bf16.msra.mxu0 %v1211
    %1914 = vmatpush.bf16.msra.mxu0 %v1209
    %1915 = vmatpush.bf16.msra.mxu0 %v1207
    %1916 = vmatpush.bf16.msra.mxu0 %v1205
    %1917 = vmatpush.bf16.msra.mxu0 %v1203
    %1918 = vmatpush.bf16.msra.mxu0 %v1201
    %1919 = vmatpush.bf16.msra.mxu0 %v1199
    %1920 = vmatmul.bf16.gmra.mxu0 %v1844
    %v1921 = vpop.f32.mrf.mxu0
    %v1922 = vadd.f32 %v1909, %v1921
    %v1923 = vpop.f32.mrf.mxu0
    %1924 = vdwg.mxu0
    %1925 = vmatpush.bf16.msra.mxu0 %v1229
    %1926 = vmatpush.bf16.msra.mxu0 %v1227
    %1927 = vmatpush.bf16.msra.mxu0 %v1225
    %1928 = vmatpush.bf16.msra.mxu0 %v1223
    %1929 = vmatpush.bf16.msra.mxu0 %v1221
    %1930 = vmatpush.bf16.msra.mxu0 %v1219
    %1931 = vmatpush.bf16.msra.mxu0 %v1217
    %1932 = vmatpush.bf16.msra.mxu0 %v1215
    %1933 = vmatmul.bf16.gmra.mxu0 %v1845
    %v1934 = vpop.f32.mrf.mxu0
    %v1935 = vadd.f32 %v1922, %v1934
    %v1936 = vpop.f32.mrf.mxu0
    %1937 = vdwg.mxu0
    %1938 = vmatpush.bf16.msra.mxu0 %v1245
    %1939 = vmatpush.bf16.msra.mxu0 %v1243
    %1940 = vmatpush.bf16.msra.mxu0 %v1241
    %1941 = vmatpush.bf16.msra.mxu0 %v1239
    %1942 = vmatpush.bf16.msra.mxu0 %v1237
    %1943 = vmatpush.bf16.msra.mxu0 %v1235
    %1944 = vmatpush.bf16.msra.mxu0 %v1233
    %1945 = vmatpush.bf16.msra.mxu0 %v1231
    %1946 = vmatmul.bf16.gmra.mxu0 %v1846
    %v1947 = vpop.f32.mrf.mxu0
    %v1948 = vadd.f32 %v1935, %v1947
    %v1949 = vpop.f32.mrf.mxu0
    %1950 = vdwg.mxu0
    %v1951 = vmax.f32 %v1896, 0.0
    %v1952 = vmax.f32 %v1948, 0.0
    %v1953 = vpack.c.bf16 %v1951, %v1951
    %v1954 = vpack.c.bf16 %v1952, %v1952
    %v1955 = vadd.s32 %v799, 20
    %1956 = vset.pattern.permute.xlu0 4
    %1957 = vperm.xlu0 %1956, %v1955
    %v1958 = vpop.permute.xlu0 %1957
    %vm1959 = vcmp.eq.s32.totalorder %v874, %v1958
    %v1960 = vsel %vm1959, 1, 0
    %v1961 = vcvt.s32.f32 %v1960
    %v1962 = vpack.c.bf16 %v1961, %v1961
    %v1964 = vsel %vm284, %v1962, 0
    %1966 = vmatpush.bf16.msra.mxu0 0
    %1967 = vmatpush.bf16.msra.mxu0 0
    %1968 = vmatpush.bf16.msra.mxu0 0
    %1969 = vmatpush.bf16.msra.mxu0 0
    %1970 = vmatpush.bf16.msra.mxu0 0
    %1971 = vmatpush.bf16.msra.mxu0 0
    %1972 = vmatpush.bf16.msra.mxu0 %v910
    %1973 = vmatpush.bf16.msra.mxu0 %v906
    %1974 = vmatmul.bf16.gmra.mxu0 %v1964
    %v1975 = vpop.f32.mrf.mxu0
    %v1976 = vadd.f32 0.0, %v1975
    %v1977 = vpop.f32.mrf.mxu0
    %1978 = vdwg.mxu0
    %1979 = vmatpush.bf16.msra.mxu0 0
    %1980 = vmatpush.bf16.msra.mxu0 0
    %1981 = vmatpush.bf16.msra.mxu0 0
    %1982 = vmatpush.bf16.msra.mxu0 0
    %1983 = vmatpush.bf16.msra.mxu0 0
    %1984 = vmatpush.bf16.msra.mxu0 0
    %1985 = vmatpush.bf16.msra.mxu0 %v911
    %1986 = vmatpush.bf16.msra.mxu0 %v907
    %1987 = vmatmul.bf16.gmra.mxu0 %v1964
    %v1988 = vpop.f32.mrf.mxu0
    %v1989 = vadd.f32 0.0, %v1988
    %v1990 = vpop.f32.mrf.mxu0
    %1991 = vdwg.mxu0
    %1992 = vmatpush.bf16.msra.mxu0 0
    %1993 = vmatpush.bf16.msra.mxu0 0
    %1994 = vmatpush.bf16.msra.mxu0 0
    %1995 = vmatpush.bf16.msra.mxu0 0
    %1996 = vmatpush.bf16.msra.mxu0 0
    %1997 = vmatpush.bf16.msra.mxu0 0
    %1998 = vmatpush.bf16.msra.mxu0 %v912
    %1999 = vmatpush.bf16.msra.mxu0 %v908
    %2000 = vmatmul.bf16.gmra.mxu0 %v1964
    %v2001 = vpop.f32.mrf.mxu0
    %v2002 = vadd.f32 0.0, %v2001
    %v2003 = vpop.f32.mrf.mxu0
    %2004 = vdwg.mxu0
    %2005 = vmatpush.bf16.msra.mxu0 0
    %2006 = vmatpush.bf16.msra.mxu0 0
    %2007 = vmatpush.bf16.msra.mxu0 0
    %2008 = vmatpush.bf16.msra.mxu0 0
    %2009 = vmatpush.bf16.msra.mxu0 0
    %2010 = vmatpush.bf16.msra.mxu0 0
    %2011 = vmatpush.bf16.msra.mxu0 %v913
    %2012 = vmatpush.bf16.msra.mxu0 %v909
    %2013 = vmatmul.bf16.gmra.mxu0 %v1964
    %v2014 = vpop.f32.mrf.mxu0
    %v2015 = vadd.f32 0.0, %v2014
    %v2016 = vpop.f32.mrf.mxu0
    %2017 = vdwg.mxu0
    %v2018 = vmax.f32 %v1976, 0.0
    %v2019 = vmax.f32 %v1989, 0.0
    %v2020 = vmax.f32 %v2002, 0.0
    %v2021 = vmax.f32 %v2015, 0.0
    %v2022 = vpack.c.bf16 %v2018, %v2018
    %v2023 = vpack.c.bf16 %v2019, %v2019
    %v2024 = vpack.c.bf16 %v2020, %v2020
    %v2025 = vpack.c.bf16 %v2021, %v2021
    %2026 = vmatpush.bf16.msra.mxu0 %v1196
    %2027 = vmatpush.bf16.msra.mxu0 %v1194
    %2028 = vmatpush.bf16.msra.mxu0 %v1192
    %2029 = vmatpush.bf16.msra.mxu0 %v1190
    %2030 = vmatpush.bf16.msra.mxu0 %v1188
    %2031 = vmatpush.bf16.msra.mxu0 %v1186
    %2032 = vmatpush.bf16.msra.mxu0 %v1184
    %2033 = vmatpush.bf16.msra.mxu0 %v1182
    %2034 = vmatmul.bf16.gmra.mxu0 %v2022
    %v2035 = vpop.f32.mrf.mxu0
    %v2036 = vadd.f32 %v986, %v2035
    %v2037 = vpop.f32.mrf.mxu0
    %2038 = vdwg.mxu0
    %2039 = vmatpush.bf16.msra.mxu0 %v1212
    %2040 = vmatpush.bf16.msra.mxu0 %v1210
    %2041 = vmatpush.bf16.msra.mxu0 %v1208
    %2042 = vmatpush.bf16.msra.mxu0 %v1206
    %2043 = vmatpush.bf16.msra.mxu0 %v1204
    %2044 = vmatpush.bf16.msra.mxu0 %v1202
    %2045 = vmatpush.bf16.msra.mxu0 %v1200
    %2046 = vmatpush.bf16.msra.mxu0 %v1198
    %2047 = vmatmul.bf16.gmra.mxu0 %v2023
    %v2048 = vpop.f32.mrf.mxu0
    %v2049 = vadd.f32 %v2036, %v2048
    %v2050 = vpop.f32.mrf.mxu0
    %2051 = vdwg.mxu0
    %2052 = vmatpush.bf16.msra.mxu0 %v1228
    %2053 = vmatpush.bf16.msra.mxu0 %v1226
    %2054 = vmatpush.bf16.msra.mxu0 %v1224
    %2055 = vmatpush.bf16.msra.mxu0 %v1222
    %2056 = vmatpush.bf16.msra.mxu0 %v1220
    %2057 = vmatpush.bf16.msra.mxu0 %v1218
    %2058 = vmatpush.bf16.msra.mxu0 %v1216
    %2059 = vmatpush.bf16.msra.mxu0 %v1214
    %2060 = vmatmul.bf16.gmra.mxu0 %v2024
    %v2061 = vpop.f32.mrf.mxu0
    %v2062 = vadd.f32 %v2049, %v2061
    %v2063 = vpop.f32.mrf.mxu0
    %2064 = vdwg.mxu0
    %2065 = vmatpush.bf16.msra.mxu0 %v1244
    %2066 = vmatpush.bf16.msra.mxu0 %v1242
    %2067 = vmatpush.bf16.msra.mxu0 %v1240
    %2068 = vmatpush.bf16.msra.mxu0 %v1238
    %2069 = vmatpush.bf16.msra.mxu0 %v1236
    %2070 = vmatpush.bf16.msra.mxu0 %v1234
    %2071 = vmatpush.bf16.msra.mxu0 %v1232
    %2072 = vmatpush.bf16.msra.mxu0 %v1230
    %2073 = vmatmul.bf16.gmra.mxu0 %v2025
    %v2074 = vpop.f32.mrf.mxu0
    %v2075 = vadd.f32 %v2062, %v2074
    %v2076 = vpop.f32.mrf.mxu0
    %2077 = vdwg.mxu0
    %2078 = vmatpush.bf16.msra.mxu0 %v1197
    %2079 = vmatpush.bf16.msra.mxu0 %v1195
    %2080 = vmatpush.bf16.msra.mxu0 %v1193
    %2081 = vmatpush.bf16.msra.mxu0 %v1191
    %2082 = vmatpush.bf16.msra.mxu0 %v1189
    %2083 = vmatpush.bf16.msra.mxu0 %v1187
    %2084 = vmatpush.bf16.msra.mxu0 %v1185
    %2085 = vmatpush.bf16.msra.mxu0 %v1183
    %2086 = vmatmul.bf16.gmra.mxu0 %v2022
    %v2087 = vpop.f32.mrf.mxu0
    %v2088 = vadd.f32 %v987, %v2087
    %v2089 = vpop.f32.mrf.mxu0
    %2090 = vdwg.mxu0
    %2091 = vmatpush.bf16.msra.mxu0 %v1213
    %2092 = vmatpush.bf16.msra.mxu0 %v1211
    %2093 = vmatpush.bf16.msra.mxu0 %v1209
    %2094 = vmatpush.bf16.msra.mxu0 %v1207
    %2095 = vmatpush.bf16.msra.mxu0 %v1205
    %2096 = vmatpush.bf16.msra.mxu0 %v1203
    %2097 = vmatpush.bf16.msra.mxu0 %v1201
    %2098 = vmatpush.bf16.msra.mxu0 %v1199
    %2099 = vmatmul.bf16.gmra.mxu0 %v2023
    %v2100 = vpop.f32.mrf.mxu0
    %v2101 = vadd.f32 %v2088, %v2100
    %v2102 = vpop.f32.mrf.mxu0
    %2103 = vdwg.mxu0
    %2104 = vmatpush.bf16.msra.mxu0 %v1229
    %2105 = vmatpush.bf16.msra.mxu0 %v1227
    %2106 = vmatpush.bf16.msra.mxu0 %v1225
    %2107 = vmatpush.bf16.msra.mxu0 %v1223
    %2108 = vmatpush.bf16.msra.mxu0 %v1221
    %2109 = vmatpush.bf16.msra.mxu0 %v1219
    %2110 = vmatpush.bf16.msra.mxu0 %v1217
    %2111 = vmatpush.bf16.msra.mxu0 %v1215
    %2112 = vmatmul.bf16.gmra.mxu0 %v2024
    %v2113 = vpop.f32.mrf.mxu0
    %v2114 = vadd.f32 %v2101, %v2113
    %v2115 = vpop.f32.mrf.mxu0
    %2116 = vdwg.mxu0
    %2117 = vmatpush.bf16.msra.mxu0 %v1245
    %2118 = vmatpush.bf16.msra.mxu0 %v1243
    %2119 = vmatpush.bf16.msra.mxu0 %v1241
    %2120 = vmatpush.bf16.msra.mxu0 %v1239
    %2121 = vmatpush.bf16.msra.mxu0 %v1237
    %2122 = vmatpush.bf16.msra.mxu0 %v1235
    %2123 = vmatpush.bf16.msra.mxu0 %v1233
    %2124 = vmatpush.bf16.msra.mxu0 %v1231
    %2125 = vmatmul.bf16.gmra.mxu0 %v2025
    %v2126 = vpop.f32.mrf.mxu0
    %v2127 = vadd.f32 %v2114, %v2126
    %v2128 = vpop.f32.mrf.mxu0
    %2129 = vdwg.mxu0
    %v2130 = vmax.f32 %v2075, 0.0
    %v2131 = vmax.f32 %v2127, 0.0
    %v2132 = vpack.c.bf16 %v2130, %v2130
    %v2133 = vpack.c.bf16 %v2131, %v2131
    %v2134 = vld [vmem:[%s9 + $0x40] sm:$0xf]
    %v2135 = vld [vmem:[%s9 + $0x44] sm:$0xf]
    %v2136 = vld [vmem:[%s9 + $0x48] sm:$0xf]
    %v2137 = vld [vmem:[%s9 + $0x4c] sm:$0xf]
    %v2138 = vld [vmem:[%s9 + $0x50] sm:$0xf]
    %v2139 = vld [vmem:[%s9 + $0x54] sm:$0xf]
    %v2140 = vld [vmem:[%s9 + $0x58] sm:$0xf]
    %v2141 = vld [vmem:[%s9 + $0x5c] sm:$0xf]
    %v2142 = vld [vmem:[%s9 + $0x60] sm:$0xf]
    %v2143 = vld [vmem:[%s9 + $0x64] sm:$0xf]
    %v2144 = vld [vmem:[%s9 + $0x68] sm:$0xf]
    %v2145 = vld [vmem:[%s9 + $0x6c] sm:$0xf]
    %v2146 = vld [vmem:[%s9 + $0x70] sm:$0xf]
    %v2147 = vld [vmem:[%s9 + $0x74] sm:$0xf]
    %v2148 = vld [vmem:[%s9 + $0x78] sm:$0xf]
    %v2149 = vld [vmem:[%s9 + $0x7c] sm:$0xf]
    %v2150 = vld [vmem:[%s9 + $0x80] sm:$0xf]
    %v2151 = vld [vmem:[%s9 + $0x84] sm:$0xf]
    %v2152 = vld [vmem:[%s9 + $0x88] sm:$0xf]
    %v2153 = vld [vmem:[%s9 + $0x8c] sm:$0xf]
    %v2154 = vld [vmem:[%s9 + $0x90] sm:$0xf]
    %v2155 = vld [vmem:[%s9 + $0x94] sm:$0xf]
    %v2156 = vld [vmem:[%s9 + $0x98] sm:$0xf]
    %v2157 = vld [vmem:[%s9 + $0x9c] sm:$0xf]
    %v2158 = vld [vmem:[%s9 + $0xa0] sm:$0xf]
    %v2159 = vld [vmem:[%s9 + $0xa4] sm:$0xf]
    %v2160 = vld [vmem:[%s9 + $0xa8] sm:$0xf]
    %v2161 = vld [vmem:[%s9 + $0xac] sm:$0xf]
    %v2162 = vld [vmem:[%s9 + $0xb0] sm:$0xf]
    %v2163 = vld [vmem:[%s9 + $0xb4] sm:$0xf]
    %v2164 = vld [vmem:[%s9 + $0xb8] sm:$0xf]
    %v2165 = vld [vmem:[%s9 + $0xbc] sm:$0xf]
    %v2198 = vunpack.c.l.b16 %v2134
    %v2199 = vunpack.c.l.b16 %v2135
    %v2200 = vunpack.c.l.b16 %v2136
    %v2201 = vunpack.c.l.b16 %v2137
    %v2202 = vunpack.c.l.b16 %v2138
    %v2203 = vunpack.c.l.b16 %v2139
    %v2204 = vunpack.c.l.b16 %v2140
    %v2205 = vunpack.c.l.b16 %v2141
    %v2206 = vunpack.c.l.b16 %v2142
    %v2207 = vunpack.c.l.b16 %v2143
    %v2208 = vunpack.c.l.b16 %v2144
    %v2209 = vunpack.c.l.b16 %v2145
    %v2210 = vunpack.c.l.b16 %v2146
    %v2211 = vunpack.c.l.b16 %v2147
    %v2212 = vunpack.c.l.b16 %v2148
    %v2213 = vunpack.c.l.b16 %v2149
    %v2214 = vunpack.c.l.b16 %v2150
    %v2215 = vunpack.c.l.b16 %v2151
    %v2216 = vunpack.c.l.b16 %v2152
    %v2217 = vunpack.c.l.b16 %v2153
    %v2218 = vunpack.c.l.b16 %v2154
    %v2219 = vunpack.c.l.b16 %v2155
    %v2220 = vunpack.c.l.b16 %v2156
    %v2221 = vunpack.c.l.b16 %v2157
    %v2222 = vunpack.c.l.b16 %v2158
    %v2223 = vunpack.c.l.b16 %v2159
    %v2224 = vunpack.c.l.b16 %v2160
    %v2225 = vunpack.c.l.b16 %v2161
    %v2226 = vunpack.c.l.b16 %v2162
    %v2227 = vunpack.c.l.b16 %v2163
    %v2228 = vunpack.c.l.b16 %v2164
    %v2229 = vunpack.c.l.b16 %v2165
    %v2230 = vpack.c.b16 %v2199, %v2198
    %v2231 = vpack.c.b16 %v2201, %v2200
    %v2232 = vpack.c.b16 %v2203, %v2202
    %v2233 = vpack.c.b16 %v2205, %v2204
    %v2234 = vpack.c.b16 %v2207, %v2206
    %v2235 = vpack.c.b16 %v2209, %v2208
    %v2236 = vpack.c.b16 %v2211, %v2210
    %v2237 = vpack.c.b16 %v2213, %v2212
    %v2238 = vpack.c.b16 %v2215, %v2214
    %v2239 = vpack.c.b16 %v2217, %v2216
    %v2240 = vpack.c.b16 %v2219, %v2218
    %v2241 = vpack.c.b16 %v2221, %v2220
    %v2242 = vpack.c.b16 %v2223, %v2222
    %v2243 = vpack.c.b16 %v2225, %v2224
    %v2244 = vpack.c.b16 %v2227, %v2226
    %v2245 = vpack.c.b16 %v2229, %v2228
    %2262 = vmatpush.bf16.msra.mxu0 %v2237
    %2263 = vmatpush.bf16.msra.mxu0 %v2236
    %2264 = vmatpush.bf16.msra.mxu0 %v2235
    %2265 = vmatpush.bf16.msra.mxu0 %v2234
    %2266 = vmatpush.bf16.msra.mxu0 %v2233
    %2267 = vmatpush.bf16.msra.mxu0 %v2232
    %2268 = vmatpush.bf16.msra.mxu0 %v2231
    %2269 = vmatpush.bf16.msra.mxu0 %v2230
    %2270 = vmatmul.bf16.gmra.mxu0 %v1416
    %v2271 = vpop.f32.mrf.mxu0
    %v2272 = vadd.f32 0.0, %v2271
    %v2273 = vpop.f32.mrf.mxu0
    %2274 = vdwg.mxu0
    %2275 = vmatpush.bf16.msra.mxu0 %v2245
    %2276 = vmatpush.bf16.msra.mxu0 %v2244
    %2277 = vmatpush.bf16.msra.mxu0 %v2243
    %2278 = vmatpush.bf16.msra.mxu0 %v2242
    %2279 = vmatpush.bf16.msra.mxu0 %v2241
    %2280 = vmatpush.bf16.msra.mxu0 %v2240
    %2281 = vmatpush.bf16.msra.mxu0 %v2239
    %2282 = vmatpush.bf16.msra.mxu0 %v2238
    %2283 = vmatmul.bf16.gmra.mxu0 %v1417
    %v2284 = vpop.f32.mrf.mxu0
    %v2285 = vadd.f32 %v2272, %v2284
    %v2286 = vpop.f32.mrf.mxu0
    %2287 = vdwg.mxu0
    %v2304 = vunpack.c.l.b16 %v783
    %v2305 = vunpack.c.l.b16 %v784
    %v2306 = vunpack.c.l.b16 %v785
    %v2307 = vunpack.c.l.b16 %v786
    %v2308 = vunpack.c.l.b16 %v787
    %v2309 = vunpack.c.l.b16 %v788
    %v2310 = vunpack.c.l.b16 %v789
    %v2311 = vunpack.c.l.b16 %v790
    %v2312 = vunpack.c.l.b16 %v791
    %v2313 = vunpack.c.l.b16 %v792
    %v2314 = vunpack.c.l.b16 %v793
    %v2315 = vunpack.c.l.b16 %v794
    %v2316 = vunpack.c.l.b16 %v795
    %v2317 = vunpack.c.l.b16 %v796
    %v2318 = vunpack.c.l.b16 %v797
    %v2319 = vunpack.c.l.b16 %v798
    %v2320 = vpack.c.b16 %v2305, %v2304
    %v2321 = vpack.c.b16 %v2307, %v2306
    %v2322 = vpack.c.b16 %v2309, %v2308
    %v2323 = vpack.c.b16 %v2311, %v2310
    %v2324 = vpack.c.b16 %v2313, %v2312
    %v2325 = vpack.c.b16 %v2315, %v2314
    %v2326 = vpack.c.b16 %v2317, %v2316
    %v2327 = vpack.c.b16 %v2319, %v2318
    %2336 = vmatpush.bf16.msra.mxu0 %v2327
    %2337 = vmatpush.bf16.msra.mxu0 %v2326
    %2338 = vmatpush.bf16.msra.mxu0 %v2325
    %2339 = vmatpush.bf16.msra.mxu0 %v2324
    %2340 = vmatpush.bf16.msra.mxu0 %v2323
    %2341 = vmatpush.bf16.msra.mxu0 %v2322
    %2342 = vmatpush.bf16.msra.mxu0 %v2321
    %2343 = vmatpush.bf16.msra.mxu0 %v2320
    %2344 = vmatmul.bf16.gmra.mxu0 %v782
    %v2345 = vpop.f32.mrf.mxu0
    %v2346 = vadd.f32 %v2285, %v2345
    %v2347 = vpop.f32.mrf.mxu0
    %2348 = vdwg.mxu0
    %v2349 = vld [vmem:[%s9 + $0xc0] sm:$0xf]
    %v2350 = vld [vmem:[%s9 + $0xc4] sm:$0xf]
    %v2351 = vld [vmem:[%s9 + $0xc8] sm:$0xf]
    %v2352 = vld [vmem:[%s9 + $0xcc] sm:$0xf]
    %v2353 = vld [vmem:[%s9 + $0xd0] sm:$0xf]
    %v2354 = vld [vmem:[%s9 + $0xd4] sm:$0xf]
    %v2355 = vld [vmem:[%s9 + $0xd8] sm:$0xf]
    %v2356 = vld [vmem:[%s9 + $0xdc] sm:$0xf]
    %v2357 = vld [vmem:[%s9 + $0xe0] sm:$0xf]
    %v2358 = vld [vmem:[%s9 + $0xe4] sm:$0xf]
    %v2359 = vld [vmem:[%s9 + $0xe8] sm:$0xf]
    %v2360 = vld [vmem:[%s9 + $0xec] sm:$0xf]
    %v2361 = vld [vmem:[%s9 + $0xf0] sm:$0xf]
    %v2362 = vld [vmem:[%s9 + $0xf4] sm:$0xf]
    %v2363 = vld [vmem:[%s9 + $0xf8] sm:$0xf]
    %v2364 = vld [vmem:[%s9 + $0xfc] sm:$0xf]
    %v2365 = vld [vmem:[%s9 + $0x100] sm:$0xf]
    %v2366 = vld [vmem:[%s9 + $0x104] sm:$0xf]
    %v2367 = vld [vmem:[%s9 + $0x108] sm:$0xf]
    %v2368 = vld [vmem:[%s9 + $0x10c] sm:$0xf]
    %v2369 = vld [vmem:[%s9 + $0x110] sm:$0xf]
    %v2370 = vld [vmem:[%s9 + $0x114] sm:$0xf]
    %v2371 = vld [vmem:[%s9 + $0x118] sm:$0xf]
    %v2372 = vld [vmem:[%s9 + $0x11c] sm:$0xf]
    %v2373 = vld [vmem:[%s9 + $0x120] sm:$0xf]
    %v2374 = vld [vmem:[%s9 + $0x124] sm:$0xf]
    %v2375 = vld [vmem:[%s9 + $0x128] sm:$0xf]
    %v2376 = vld [vmem:[%s9 + $0x12c] sm:$0xf]
    %v2377 = vld [vmem:[%s9 + $0x130] sm:$0xf]
    %v2378 = vld [vmem:[%s9 + $0x134] sm:$0xf]
    %v2379 = vld [vmem:[%s9 + $0x138] sm:$0xf]
    %v2380 = vld [vmem:[%s9 + $0x13c] sm:$0xf]
    %v2413 = vunpack.c.l.b16 %v2349
    %v2414 = vunpack.c.l.b16 %v2350
    %v2415 = vunpack.c.l.b16 %v2351
    %v2416 = vunpack.c.l.b16 %v2352
    %v2417 = vunpack.c.l.b16 %v2353
    %v2418 = vunpack.c.l.b16 %v2354
    %v2419 = vunpack.c.l.b16 %v2355
    %v2420 = vunpack.c.l.b16 %v2356
    %v2421 = vunpack.c.l.b16 %v2357
    %v2422 = vunpack.c.l.b16 %v2358
    %v2423 = vunpack.c.l.b16 %v2359
    %v2424 = vunpack.c.l.b16 %v2360
    %v2425 = vunpack.c.l.b16 %v2361
    %v2426 = vunpack.c.l.b16 %v2362
    %v2427 = vunpack.c.l.b16 %v2363
    %v2428 = vunpack.c.l.b16 %v2364
    %v2429 = vunpack.c.l.b16 %v2365
    %v2430 = vunpack.c.l.b16 %v2366
    %v2431 = vunpack.c.l.b16 %v2367
    %v2432 = vunpack.c.l.b16 %v2368
    %v2433 = vunpack.c.l.b16 %v2369
    %v2434 = vunpack.c.l.b16 %v2370
    %v2435 = vunpack.c.l.b16 %v2371
    %v2436 = vunpack.c.l.b16 %v2372
    %v2437 = vunpack.c.l.b16 %v2373
    %v2438 = vunpack.c.l.b16 %v2374
    %v2439 = vunpack.c.l.b16 %v2375
    %v2440 = vunpack.c.l.b16 %v2376
    %v2441 = vunpack.c.l.b16 %v2377
    %v2442 = vunpack.c.l.b16 %v2378
    %v2443 = vunpack.c.l.b16 %v2379
    %v2444 = vunpack.c.l.b16 %v2380
    %v2445 = vpack.c.b16 %v2414, %v2413
    %v2446 = vpack.c.b16 %v2416, %v2415
    %v2447 = vpack.c.b16 %v2418, %v2417
    %v2448 = vpack.c.b16 %v2420, %v2419
    %v2449 = vpack.c.b16 %v2422, %v2421
    %v2450 = vpack.c.b16 %v2424, %v2423
    %v2451 = vpack.c.b16 %v2426, %v2425
    %v2452 = vpack.c.b16 %v2428, %v2427
    %v2453 = vpack.c.b16 %v2430, %v2429
    %v2454 = vpack.c.b16 %v2432, %v2431
    %v2455 = vpack.c.b16 %v2434, %v2433
    %v2456 = vpack.c.b16 %v2436, %v2435
    %v2457 = vpack.c.b16 %v2438, %v2437
    %v2458 = vpack.c.b16 %v2440, %v2439
    %v2459 = vpack.c.b16 %v2442, %v2441
    %v2460 = vpack.c.b16 %v2444, %v2443
    %2477 = vmatpush.bf16.msra.mxu0 %v2452
    %2478 = vmatpush.bf16.msra.mxu0 %v2451
    %2479 = vmatpush.bf16.msra.mxu0 %v2450
    %2480 = vmatpush.bf16.msra.mxu0 %v2449
    %2481 = vmatpush.bf16.msra.mxu0 %v2448
    %2482 = vmatpush.bf16.msra.mxu0 %v2447
    %2483 = vmatpush.bf16.msra.mxu0 %v2446
    %2484 = vmatpush.bf16.msra.mxu0 %v2445
    %2485 = vmatmul.bf16.gmra.mxu0 %v1595
    %v2486 = vpop.f32.mrf.mxu0
    %v2487 = vadd.f32 0.0, %v2486
    %v2488 = vpop.f32.mrf.mxu0
    %2489 = vdwg.mxu0
    %2490 = vmatpush.bf16.msra.mxu0 %v2460
    %2491 = vmatpush.bf16.msra.mxu0 %v2459
    %2492 = vmatpush.bf16.msra.mxu0 %v2458
    %2493 = vmatpush.bf16.msra.mxu0 %v2457
    %2494 = vmatpush.bf16.msra.mxu0 %v2456
    %2495 = vmatpush.bf16.msra.mxu0 %v2455
    %2496 = vmatpush.bf16.msra.mxu0 %v2454
    %2497 = vmatpush.bf16.msra.mxu0 %v2453
    %2498 = vmatmul.bf16.gmra.mxu0 %v1596
    %v2499 = vpop.f32.mrf.mxu0
    %v2500 = vadd.f32 %v2487, %v2499
    %v2501 = vpop.f32.mrf.mxu0
    %2502 = vdwg.mxu0
    %v2503 = vadd.f32 %v2346, %v2500
    %v2504 = vld [vmem:[%s9 + $0x140] sm:$0xf]
    %v2505 = vld [vmem:[%s9 + $0x144] sm:$0xf]
    %v2506 = vld [vmem:[%s9 + $0x148] sm:$0xf]
    %v2507 = vld [vmem:[%s9 + $0x14c] sm:$0xf]
    %v2508 = vld [vmem:[%s9 + $0x150] sm:$0xf]
    %v2509 = vld [vmem:[%s9 + $0x154] sm:$0xf]
    %v2510 = vld [vmem:[%s9 + $0x158] sm:$0xf]
    %v2511 = vld [vmem:[%s9 + $0x15c] sm:$0xf]
    %v2512 = vld [vmem:[%s9 + $0x160] sm:$0xf]
    %v2513 = vld [vmem:[%s9 + $0x164] sm:$0xf]
    %v2514 = vld [vmem:[%s9 + $0x168] sm:$0xf]
    %v2515 = vld [vmem:[%s9 + $0x16c] sm:$0xf]
    %v2516 = vld [vmem:[%s9 + $0x170] sm:$0xf]
    %v2517 = vld [vmem:[%s9 + $0x174] sm:$0xf]
    %v2518 = vld [vmem:[%s9 + $0x178] sm:$0xf]
    %v2519 = vld [vmem:[%s9 + $0x17c] sm:$0xf]
    %v2520 = vld [vmem:[%s9 + $0x180] sm:$0xf]
    %v2521 = vld [vmem:[%s9 + $0x184] sm:$0xf]
    %v2522 = vld [vmem:[%s9 + $0x188] sm:$0xf]
    %v2523 = vld [vmem:[%s9 + $0x18c] sm:$0xf]
    %v2524 = vld [vmem:[%s9 + $0x190] sm:$0xf]
    %v2525 = vld [vmem:[%s9 + $0x194] sm:$0xf]
    %v2526 = vld [vmem:[%s9 + $0x198] sm:$0xf]
    %v2527 = vld [vmem:[%s9 + $0x19c] sm:$0xf]
    %v2528 = vld [vmem:[%s9 + $0x1a0] sm:$0xf]
    %v2529 = vld [vmem:[%s9 + $0x1a4] sm:$0xf]
    %v2530 = vld [vmem:[%s9 + $0x1a8] sm:$0xf]
    %v2531 = vld [vmem:[%s9 + $0x1ac] sm:$0xf]
    %v2532 = vld [vmem:[%s9 + $0x1b0] sm:$0xf]
    %v2533 = vld [vmem:[%s9 + $0x1b4] sm:$0xf]
    %v2534 = vld [vmem:[%s9 + $0x1b8] sm:$0xf]
    %v2535 = vld [vmem:[%s9 + $0x1bc] sm:$0xf]
    %v2568 = vunpack.c.l.b16 %v2504
    %v2569 = vunpack.c.l.b16 %v2505
    %v2570 = vunpack.c.l.b16 %v2506
    %v2571 = vunpack.c.l.b16 %v2507
    %v2572 = vunpack.c.l.b16 %v2508
    %v2573 = vunpack.c.l.b16 %v2509
    %v2574 = vunpack.c.l.b16 %v2510
    %v2575 = vunpack.c.l.b16 %v2511
    %v2576 = vunpack.c.l.b16 %v2512
    %v2577 = vunpack.c.l.b16 %v2513
    %v2578 = vunpack.c.l.b16 %v2514
    %v2579 = vunpack.c.l.b16 %v2515
    %v2580 = vunpack.c.l.b16 %v2516
    %v2581 = vunpack.c.l.b16 %v2517
    %v2582 = vunpack.c.l.b16 %v2518
    %v2583 = vunpack.c.l.b16 %v2519
    %v2584 = vunpack.c.l.b16 %v2520
    %v2585 = vunpack.c.l.b16 %v2521
    %v2586 = vunpack.c.l.b16 %v2522
    %v2587 = vunpack.c.l.b16 %v2523
    %v2588 = vunpack.c.l.b16 %v2524
    %v2589 = vunpack.c.l.b16 %v2525
    %v2590 = vunpack.c.l.b16 %v2526
    %v2591 = vunpack.c.l.b16 %v2527
    %v2592 = vunpack.c.l.b16 %v2528
    %v2593 = vunpack.c.l.b16 %v2529
    %v2594 = vunpack.c.l.b16 %v2530
    %v2595 = vunpack.c.l.b16 %v2531
    %v2596 = vunpack.c.l.b16 %v2532
    %v2597 = vunpack.c.l.b16 %v2533
    %v2598 = vunpack.c.l.b16 %v2534
    %v2599 = vunpack.c.l.b16 %v2535
    %v2600 = vpack.c.b16 %v2569, %v2568
    %v2601 = vpack.c.b16 %v2571, %v2570
    %v2602 = vpack.c.b16 %v2573, %v2572
    %v2603 = vpack.c.b16 %v2575, %v2574
    %v2604 = vpack.c.b16 %v2577, %v2576
    %v2605 = vpack.c.b16 %v2579, %v2578
    %v2606 = vpack.c.b16 %v2581, %v2580
    %v2607 = vpack.c.b16 %v2583, %v2582
    %v2608 = vpack.c.b16 %v2585, %v2584
    %v2609 = vpack.c.b16 %v2587, %v2586
    %v2610 = vpack.c.b16 %v2589, %v2588
    %v2611 = vpack.c.b16 %v2591, %v2590
    %v2612 = vpack.c.b16 %v2593, %v2592
    %v2613 = vpack.c.b16 %v2595, %v2594
    %v2614 = vpack.c.b16 %v2597, %v2596
    %v2615 = vpack.c.b16 %v2599, %v2598
    %2632 = vmatpush.bf16.msra.mxu0 %v2607
    %2633 = vmatpush.bf16.msra.mxu0 %v2606
    %2634 = vmatpush.bf16.msra.mxu0 %v2605
    %2635 = vmatpush.bf16.msra.mxu0 %v2604
    %2636 = vmatpush.bf16.msra.mxu0 %v2603
    %2637 = vmatpush.bf16.msra.mxu0 %v2602
    %2638 = vmatpush.bf16.msra.mxu0 %v2601
    %2639 = vmatpush.bf16.msra.mxu0 %v2600
    %2640 = vmatmul.bf16.gmra.mxu0 %v1774
    %v2641 = vpop.f32.mrf.mxu0
    %v2642 = vadd.f32 0.0, %v2641
    %v2643 = vpop.f32.mrf.mxu0
    %2644 = vdwg.mxu0
    %2645 = vmatpush.bf16.msra.mxu0 %v2615
    %2646 = vmatpush.bf16.msra.mxu0 %v2614
    %2647 = vmatpush.bf16.msra.mxu0 %v2613
    %2648 = vmatpush.bf16.msra.mxu0 %v2612
    %2649 = vmatpush.bf16.msra.mxu0 %v2611
    %2650 = vmatpush.bf16.msra.mxu0 %v2610
    %2651 = vmatpush.bf16.msra.mxu0 %v2609
    %2652 = vmatpush.bf16.msra.mxu0 %v2608
    %2653 = vmatmul.bf16.gmra.mxu0 %v1775
    %v2654 = vpop.f32.mrf.mxu0
    %v2655 = vadd.f32 %v2642, %v2654
    %v2656 = vpop.f32.mrf.mxu0
    %2657 = vdwg.mxu0
    %v2658 = vadd.f32 %v2503, %v2655
    %v2659 = vld [vmem:[%s9 + $0x1c0] sm:$0xf]
    %v2660 = vld [vmem:[%s9 + $0x1c4] sm:$0xf]
    %v2661 = vld [vmem:[%s9 + $0x1c8] sm:$0xf]
    %v2662 = vld [vmem:[%s9 + $0x1cc] sm:$0xf]
    %v2663 = vld [vmem:[%s9 + $0x1d0] sm:$0xf]
    %v2664 = vld [vmem:[%s9 + $0x1d4] sm:$0xf]
    %v2665 = vld [vmem:[%s9 + $0x1d8] sm:$0xf]
    %v2666 = vld [vmem:[%s9 + $0x1dc] sm:$0xf]
    %v2667 = vld [vmem:[%s9 + $0x1e0] sm:$0xf]
    %v2668 = vld [vmem:[%s9 + $0x1e4] sm:$0xf]
    %v2669 = vld [vmem:[%s9 + $0x1e8] sm:$0xf]
    %v2670 = vld [vmem:[%s9 + $0x1ec] sm:$0xf]
    %v2671 = vld [vmem:[%s9 + $0x1f0] sm:$0xf]
    %v2672 = vld [vmem:[%s9 + $0x1f4] sm:$0xf]
    %v2673 = vld [vmem:[%s9 + $0x1f8] sm:$0xf]
    %v2674 = vld [vmem:[%s9 + $0x1fc] sm:$0xf]
    %v2675 = vld [vmem:[%s9 + $0x200] sm:$0xf]
    %v2676 = vld [vmem:[%s9 + $0x204] sm:$0xf]
    %v2677 = vld [vmem:[%s9 + $0x208] sm:$0xf]
    %v2678 = vld [vmem:[%s9 + $0x20c] sm:$0xf]
    %v2679 = vld [vmem:[%s9 + $0x210] sm:$0xf]
    %v2680 = vld [vmem:[%s9 + $0x214] sm:$0xf]
    %v2681 = vld [vmem:[%s9 + $0x218] sm:$0xf]
    %v2682 = vld [vmem:[%s9 + $0x21c] sm:$0xf]
    %v2683 = vld [vmem:[%s9 + $0x220] sm:$0xf]
    %v2684 = vld [vmem:[%s9 + $0x224] sm:$0xf]
    %v2685 = vld [vmem:[%s9 + $0x228] sm:$0xf]
    %v2686 = vld [vmem:[%s9 + $0x22c] sm:$0xf]
    %v2687 = vld [vmem:[%s9 + $0x230] sm:$0xf]
    %v2688 = vld [vmem:[%s9 + $0x234] sm:$0xf]
    %v2689 = vld [vmem:[%s9 + $0x238] sm:$0xf]
    %v2690 = vld [vmem:[%s9 + $0x23c] sm:$0xf]
    %v2723 = vunpack.c.l.b16 %v2659
    %v2724 = vunpack.c.l.b16 %v2660
    %v2725 = vunpack.c.l.b16 %v2661
    %v2726 = vunpack.c.l.b16 %v2662
    %v2727 = vunpack.c.l.b16 %v2663
    %v2728 = vunpack.c.l.b16 %v2664
    %v2729 = vunpack.c.l.b16 %v2665
    %v2730 = vunpack.c.l.b16 %v2666
    %v2731 = vunpack.c.l.b16 %v2667
    %v2732 = vunpack.c.l.b16 %v2668
    %v2733 = vunpack.c.l.b16 %v2669
    %v2734 = vunpack.c.l.b16 %v2670
    %v2735 = vunpack.c.l.b16 %v2671
    %v2736 = vunpack.c.l.b16 %v2672
    %v2737 = vunpack.c.l.b16 %v2673
    %v2738 = vunpack.c.l.b16 %v2674
    %v2739 = vunpack.c.l.b16 %v2675
    %v2740 = vunpack.c.l.b16 %v2676
    %v2741 = vunpack.c.l.b16 %v2677
    %v2742 = vunpack.c.l.b16 %v2678
    %v2743 = vunpack.c.l.b16 %v2679
    %v2744 = vunpack.c.l.b16 %v2680
    %v2745 = vunpack.c.l.b16 %v2681
    %v2746 = vunpack.c.l.b16 %v2682
    %v2747 = vunpack.c.l.b16 %v2683
    %v2748 = vunpack.c.l.b16 %v2684
    %v2749 = vunpack.c.l.b16 %v2685
    %v2750 = vunpack.c.l.b16 %v2686
    %v2751 = vunpack.c.l.b16 %v2687
    %v2752 = vunpack.c.l.b16 %v2688
    %v2753 = vunpack.c.l.b16 %v2689
    %v2754 = vunpack.c.l.b16 %v2690
    %v2755 = vpack.c.b16 %v2724, %v2723
    %v2756 = vpack.c.b16 %v2726, %v2725
    %v2757 = vpack.c.b16 %v2728, %v2727
    %v2758 = vpack.c.b16 %v2730, %v2729
    %v2759 = vpack.c.b16 %v2732, %v2731
    %v2760 = vpack.c.b16 %v2734, %v2733
    %v2761 = vpack.c.b16 %v2736, %v2735
    %v2762 = vpack.c.b16 %v2738, %v2737
    %v2763 = vpack.c.b16 %v2740, %v2739
    %v2764 = vpack.c.b16 %v2742, %v2741
    %v2765 = vpack.c.b16 %v2744, %v2743
    %v2766 = vpack.c.b16 %v2746, %v2745
    %v2767 = vpack.c.b16 %v2748, %v2747
    %v2768 = vpack.c.b16 %v2750, %v2749
    %v2769 = vpack.c.b16 %v2752, %v2751
    %v2770 = vpack.c.b16 %v2754, %v2753
    %2787 = vmatpush.bf16.msra.mxu0 %v2762
    %2788 = vmatpush.bf16.msra.mxu0 %v2761
    %2789 = vmatpush.bf16.msra.mxu0 %v2760
    %2790 = vmatpush.bf16.msra.mxu0 %v2759
    %2791 = vmatpush.bf16.msra.mxu0 %v2758
    %2792 = vmatpush.bf16.msra.mxu0 %v2757
    %2793 = vmatpush.bf16.msra.mxu0 %v2756
    %2794 = vmatpush.bf16.msra.mxu0 %v2755
    %2795 = vmatmul.bf16.gmra.mxu0 %v1953
    %v2796 = vpop.f32.mrf.mxu0
    %v2797 = vadd.f32 0.0, %v2796
    %v2798 = vpop.f32.mrf.mxu0
    %2799 = vdwg.mxu0
    %2800 = vmatpush.bf16.msra.mxu0 %v2770
    %2801 = vmatpush.bf16.msra.mxu0 %v2769
    %2802 = vmatpush.bf16.msra.mxu0 %v2768
    %2803 = vmatpush.bf16.msra.mxu0 %v2767
    %2804 = vmatpush.bf16.msra.mxu0 %v2766
    %2805 = vmatpush.bf16.msra.mxu0 %v2765
    %2806 = vmatpush.bf16.msra.mxu0 %v2764
    %2807 = vmatpush.bf16.msra.mxu0 %v2763
    %2808 = vmatmul.bf16.gmra.mxu0 %v1954
    %v2809 = vpop.f32.mrf.mxu0
    %v2810 = vadd.f32 %v2797, %v2809
    %v2811 = vpop.f32.mrf.mxu0
    %2812 = vdwg.mxu0
    %v2813 = vadd.f32 %v2658, %v2810
    %v2814 = vld [vmem:[%s9 + $0x240] sm:$0xf]
    %v2815 = vld [vmem:[%s9 + $0x244] sm:$0xf]
    %v2816 = vld [vmem:[%s9 + $0x248] sm:$0xf]
    %v2817 = vld [vmem:[%s9 + $0x24c] sm:$0xf]
    %v2818 = vld [vmem:[%s9 + $0x250] sm:$0xf]
    %v2819 = vld [vmem:[%s9 + $0x254] sm:$0xf]
    %v2820 = vld [vmem:[%s9 + $0x258] sm:$0xf]
    %v2821 = vld [vmem:[%s9 + $0x25c] sm:$0xf]
    %v2822 = vld [vmem:[%s9 + $0x260] sm:$0xf]
    %v2823 = vld [vmem:[%s9 + $0x264] sm:$0xf]
    %v2824 = vld [vmem:[%s9 + $0x268] sm:$0xf]
    %v2825 = vld [vmem:[%s9 + $0x26c] sm:$0xf]
    %v2826 = vld [vmem:[%s9 + $0x270] sm:$0xf]
    %v2827 = vld [vmem:[%s9 + $0x274] sm:$0xf]
    %v2828 = vld [vmem:[%s9 + $0x278] sm:$0xf]
    %v2829 = vld [vmem:[%s9 + $0x27c] sm:$0xf]
    %v2830 = vld [vmem:[%s9 + $0x280] sm:$0xf]
    %v2831 = vld [vmem:[%s9 + $0x284] sm:$0xf]
    %v2832 = vld [vmem:[%s9 + $0x288] sm:$0xf]
    %v2833 = vld [vmem:[%s9 + $0x28c] sm:$0xf]
    %v2834 = vld [vmem:[%s9 + $0x290] sm:$0xf]
    %v2835 = vld [vmem:[%s9 + $0x294] sm:$0xf]
    %v2836 = vld [vmem:[%s9 + $0x298] sm:$0xf]
    %v2837 = vld [vmem:[%s9 + $0x29c] sm:$0xf]
    %v2838 = vld [vmem:[%s9 + $0x2a0] sm:$0xf]
    %v2839 = vld [vmem:[%s9 + $0x2a4] sm:$0xf]
    %v2840 = vld [vmem:[%s9 + $0x2a8] sm:$0xf]
    %v2841 = vld [vmem:[%s9 + $0x2ac] sm:$0xf]
    %v2842 = vld [vmem:[%s9 + $0x2b0] sm:$0xf]
    %v2843 = vld [vmem:[%s9 + $0x2b4] sm:$0xf]
    %v2844 = vld [vmem:[%s9 + $0x2b8] sm:$0xf]
    %v2845 = vld [vmem:[%s9 + $0x2bc] sm:$0xf]
    %v2878 = vunpack.c.l.b16 %v2814
    %v2879 = vunpack.c.l.b16 %v2815
    %v2880 = vunpack.c.l.b16 %v2816
    %v2881 = vunpack.c.l.b16 %v2817
    %v2882 = vunpack.c.l.b16 %v2818
    %v2883 = vunpack.c.l.b16 %v2819
    %v2884 = vunpack.c.l.b16 %v2820
    %v2885 = vunpack.c.l.b16 %v2821
    %v2886 = vunpack.c.l.b16 %v2822
    %v2887 = vunpack.c.l.b16 %v2823
    %v2888 = vunpack.c.l.b16 %v2824
    %v2889 = vunpack.c.l.b16 %v2825
    %v2890 = vunpack.c.l.b16 %v2826
    %v2891 = vunpack.c.l.b16 %v2827
    %v2892 = vunpack.c.l.b16 %v2828
    %v2893 = vunpack.c.l.b16 %v2829
    %v2894 = vunpack.c.l.b16 %v2830
    %v2895 = vunpack.c.l.b16 %v2831
    %v2896 = vunpack.c.l.b16 %v2832
    %v2897 = vunpack.c.l.b16 %v2833
    %v2898 = vunpack.c.l.b16 %v2834
    %v2899 = vunpack.c.l.b16 %v2835
    %v2900 = vunpack.c.l.b16 %v2836
    %v2901 = vunpack.c.l.b16 %v2837
    %v2902 = vunpack.c.l.b16 %v2838
    %v2903 = vunpack.c.l.b16 %v2839
    %v2904 = vunpack.c.l.b16 %v2840
    %v2905 = vunpack.c.l.b16 %v2841
    %v2906 = vunpack.c.l.b16 %v2842
    %v2907 = vunpack.c.l.b16 %v2843
    %v2908 = vunpack.c.l.b16 %v2844
    %v2909 = vunpack.c.l.b16 %v2845
    %v2910 = vpack.c.b16 %v2879, %v2878
    %v2911 = vpack.c.b16 %v2881, %v2880
    %v2912 = vpack.c.b16 %v2883, %v2882
    %v2913 = vpack.c.b16 %v2885, %v2884
    %v2914 = vpack.c.b16 %v2887, %v2886
    %v2915 = vpack.c.b16 %v2889, %v2888
    %v2916 = vpack.c.b16 %v2891, %v2890
    %v2917 = vpack.c.b16 %v2893, %v2892
    %v2918 = vpack.c.b16 %v2895, %v2894
    %v2919 = vpack.c.b16 %v2897, %v2896
    %v2920 = vpack.c.b16 %v2899, %v2898
    %v2921 = vpack.c.b16 %v2901, %v2900
    %v2922 = vpack.c.b16 %v2903, %v2902
    %v2923 = vpack.c.b16 %v2905, %v2904
    %v2924 = vpack.c.b16 %v2907, %v2906
    %v2925 = vpack.c.b16 %v2909, %v2908
    %2942 = vmatpush.bf16.msra.mxu0 %v2917
    %2943 = vmatpush.bf16.msra.mxu0 %v2916
    %2944 = vmatpush.bf16.msra.mxu0 %v2915
    %2945 = vmatpush.bf16.msra.mxu0 %v2914
    %2946 = vmatpush.bf16.msra.mxu0 %v2913
    %2947 = vmatpush.bf16.msra.mxu0 %v2912
    %2948 = vmatpush.bf16.msra.mxu0 %v2911
    %2949 = vmatpush.bf16.msra.mxu0 %v2910
    %2950 = vmatmul.bf16.gmra.mxu0 %v2132
    %v2951 = vpop.f32.mrf.mxu0
    %v2952 = vadd.f32 0.0, %v2951
    %v2953 = vpop.f32.mrf.mxu0
    %2954 = vdwg.mxu0
    %2955 = vmatpush.bf16.msra.mxu0 %v2925
    %2956 = vmatpush.bf16.msra.mxu0 %v2924
    %2957 = vmatpush.bf16.msra.mxu0 %v2923
    %2958 = vmatpush.bf16.msra.mxu0 %v2922
    %2959 = vmatpush.bf16.msra.mxu0 %v2921
    %2960 = vmatpush.bf16.msra.mxu0 %v2920
    %2961 = vmatpush.bf16.msra.mxu0 %v2919
    %2962 = vmatpush.bf16.msra.mxu0 %v2918
    %2963 = vmatmul.bf16.gmra.mxu0 %v2133
    %v2964 = vpop.f32.mrf.mxu0
    %v2965 = vadd.f32 %v2952, %v2964
    %v2966 = vpop.f32.mrf.mxu0
    %2967 = vdwg.mxu0
    %v2968 = vadd.f32 %v2813, %v2965
    %v2969 = vld [vmem:[%s10] sm:$0x1]
    %v2971 = vperm.slane %v2969, 0
    %v2973 = vadd.f32 %v2968, %v2971
    %vm2974 = vcmask 9216
    %2975 = vst.msk [vmem:[#allocation2] sm:$0x3] %vm2974, %v2973
    // Predicated region
    $region46: #{forward.1} parent=1 // pred_check
      _
    $region47: #{forward.1} parent=1 // pred_check_branch
      %2977 = sbr.rel (0) target = $region49
    $region48: #{forward.1} parent=1 // pred_region
      %2979 = vsyncadd [#allocation3], 0
      %s2981 = sshll.u32 [#allocation2], 4
      %s2982 = int_to_ptr.vmem [resolvable:$true] %s2981
      %s2983 = sshll.u32 %s11, 4
      %s2984 = int_to_ptr.hbm [resolvable:$true] %s2983
      %2986 = dma.vmem_to_hbm [thread:$0]  %s2982, 32, %s2984, [#allocation3]
    $region49: #{forward.1} parent=1 // pred_fallthru
      _
    // Predicated region
    $region50: #{forward.1} parent=1 // pred_check
      _
    $region51: #{forward.1} parent=1 // pred_check_branch
      %2988 = sbr.rel (0) target = $region53
    $region52: #{forward.1} parent=1 // pred_region
      %2990 = dma.done [#allocation3], 32
    $region53: #{forward.1} parent=1 // pred_fallthru
      _
    %2991 = vsyncpa [#allocation3], 1

</llo_original>
